<compile_context>
chip_gen: v7x
topology: tpu7x:2x2x1
jax: 0.10.0
libtpu: 0.0.40
codegen_flags: <defaults>
</compile_context>

<pallas_src>
import math

import jax
import jax.numpy as jnp
from jax.experimental import pallas as pl
from jax.experimental.pallas import tpu as pltpu


def _pick_spatial_tile(m: int, target: int = 1024) -> int:
    """Largest divisor of m that is a multiple of 8 and <= target (else full m)."""
    if m <= target:
        return m
    for t in range(target, 7, -1):
        if m % t == 0 and t % 8 == 0:
            return t
    return m  # awkward m (not /8): one full-m tile -- correct, just unpipelined


def _make_detect_kernel(na, no, no_pad, nx, stride, anchors_level, tm, mode):
    nx_f = float(nx)
    stride = float(stride)
    anchors_level = [(float(w), float(h)) for (w, h) in anchors_level]

    def kernel(x_ref, w_ref, b_ref, xout_ref, *maybe_z):
        # x_ref:    (1, tm, ch)       bf16 channels-last activation tile
        # w_ref:    (ch, na*no_pad)   bf16 fused 1x1-conv weight (lane-padded/anchor)
        # b_ref:    (1,  na*no_pad)   f32 bias (lane-padded)
        # xout_ref: (1, na, tm, no)   raw head output
        # z_ref:    (1, na, tm, no)   decoded / sigmoid output (mode != "raw")
        xm = x_ref[0]                                              # (tm, ch)

        # One MXU-filling matmul covering all anchors, f32 accumulation.
        t_full = jnp.dot(xm, w_ref[...], preferred_element_type=jnp.float32)
        t_full = t_full + b_ref[...]                               # (tm, na*no_pad)

        if mode == "decode":
            mi = pl.program_id(1)
            # Flat spatial index for each row of this tile, computed at (tm, 1).
            # f32 divide + floor is exact here: ridx < 2^24 and ny, nx stay in
            # ranges where (q + (nx-1)/nx) cannot round up to q+1.
            ridx = (jax.lax.broadcasted_iota(jnp.int32, (tm, 1), 0)
                    + mi * tm).astype(jnp.float32)
            gy = jnp.floor(ridx / nx_f)
            gx = ridx - gy * nx_f
            col = jax.lax.broadcasted_iota(jnp.int32, (tm, no), 1)
            # xy = (2*sig - 0.5 + g)*stride = sig*(2*stride) + (g*stride - 0.5*stride)
            off = jnp.where(col == 0, gx, gy) * stride - 0.5 * stride
            two_stride = 2.0 * stride

        for a in range(na):                                        # na tiny: unroll
            t = t_full[:, a * no_pad:a * no_pad + no]              # lane-aligned slice
            xout_ref[0, a] = t.astype(xout_ref.dtype)              # raw head output
            if mode == "raw":
                continue
            z_ref = maybe_z[0]
            # sigmoid via EUP tanh (no VALU divide): sig = 0.5*tanh(t/2) + 0.5
            s = 0.5 * jnp.tanh(0.5 * t) + 0.5
            if mode == "metric":
                z_ref[0, a] = s.astype(z_ref.dtype)
            else:
                aw, ah = anchors_level[a]
                xy = s * two_stride + off
                s2 = s * 2.0
                wh = s2 * s2 * jnp.where(col == 2, aw, ah)
                out = jnp.where(col < 2, xy, jnp.where(col < 4, wh, s))
                z_ref[0, a] = out.astype(z_ref.dtype)

    return kernel


def detect_level(x_nchw, w, b, anchors_level, stride, nc, mode="decode",
                 compute_dtype=jnp.bfloat16):
    """One detection level: fused 1x1 conv + sigmoid + box decode.

    Returns:
      x_out: (bs, na, ny, nx, no) raw conv output (PyTorch's x[i])
      z:     (bs, na*ny*nx, no)   decoded / sigmoid predictions (None if mode=="raw")
    """
    bs, ch, ny, nx = x_nchw.shape
    no = nc + 5
    na = w.shape[0] // no
    no_pad = ((no + 127) // 128) * 128
    m = ny * nx

    # Channels-last bf16 activations -- one fused transpose+cast XLA pass.
    # TODO(synk): feed native (bs, ch, m) layout with a transposed-lhs dot to
    # drop this pass once transposed-lhs dot_general lowering is guaranteed.
    x_cl = jnp.transpose(x_nchw, (0, 2, 3, 1)).reshape(bs, m, ch).astype(compute_dtype)

    # (na*no, ch) conv weight -> fused, per-anchor lane-padded (ch, na*no_pad).
    w_r = jnp.pad(w.reshape(na, no, ch), ((0, 0), (0, no_pad - no), (0, 0)))
    w_r = jnp.transpose(w_r, (2, 0, 1)).reshape(ch, na * no_pad).astype(compute_dtype)
    b_r = jnp.pad(b.reshape(na, no), ((0, 0), (0, no_pad - no)))
    b_r = b_r.reshape(1, na * no_pad).astype(jnp.float32)

    tm = _pick_spatial_tile(m)
    grid = (bs, m // tm)

    kernel = _make_detect_kernel(na, no, no_pad, nx, stride, anchors_level, tm, mode)

    out_dtype = x_nchw.dtype
    xout_sds = jax.ShapeDtypeStruct((bs, na, m, no), out_dtype)
    out_map = lambda bi, mi: (bi, 0, mi, 0)
    if mode == "raw":
        out_shape = xout_sds
        out_specs = pl.BlockSpec((1, na, tm, no), out_map)
        n_out = 1
    else:
        out_shape = (xout_sds, jax.ShapeDtypeStruct((bs, na, m, no), out_dtype))
        out_specs = (pl.BlockSpec((1, na, tm, no), out_map),
                     pl.BlockSpec((1, na, tm, no), out_map))
        n_out = 2

    isz_in = jnp.dtype(compute_dtype).itemsize
    isz_out = jnp.dtype(out_dtype).itemsize
    cost = pl.CostEstimate(
        flops=2 * bs * m * ch * na * no_pad,
        transcendentals=0 if mode == "raw" else bs * m * na * no,
        bytes_accessed=int(x_cl.size * isz_in + w_r.size * isz_in + b_r.size * 4
                           + n_out * bs * na * m * no * isz_out),
    )

    res = pl.pallas_call(
        kernel,
        out_shape=out_shape,
        grid_spec=pltpu.PrefetchScalarGridSpec(
            num_scalar_prefetch=0,
            grid=grid,
            in_specs=[
                pl.BlockSpec((1, tm, ch), lambda bi, mi: (bi, mi, 0)),
                pl.BlockSpec((ch, na * no_pad), lambda bi, mi: (0, 0)),
                pl.BlockSpec((1, na * no_pad), lambda bi, mi: (0, 0)),
            ],
            out_specs=out_specs,
        ),
        compiler_params=pltpu.CompilerParams(
            dimension_semantics=("parallel", "parallel")),
        cost_estimate=cost,
    )(x_cl, w_r, b_r)

    if mode == "raw":
        xout, z_out = res, None
    else:
        xout, z = res
        z_out = z.reshape(bs, na * m, no)
    x_out = xout.reshape(bs, na, ny, nx, no)
    return x_out, z_out


class Detect:
    """JAX/Pallas mirror of the PyTorch Detect head."""

    def __init__(self, nc=80, anchors=(), ch=(), key=None,
                 compute_dtype=jnp.bfloat16):
        self.nc = nc
        self.no = nc + 5
        self.nl = len(anchors)
        self.na = len(anchors[0]) // 2
        self.stride = None                     # set externally, like PyTorch
        self.export = False
        self.compute_dtype = compute_dtype
        self.anchors = jnp.asarray(anchors, dtype=jnp.float32).reshape(self.nl, self.na, 2)
        # Plain-python anchors for baking into kernels as constants
        # (same raw-anchor `anchor_grid` convention as the PyTorch module).
        self.anchors_py = [[(float(a[2 * j]), float(a[2 * j + 1]))
                            for j in range(self.na)] for a in anchors]
        # 1x1 conv parameters (PyTorch-style uniform init).
        if key is None:
            key = jax.random.PRNGKey(0)
        keys = jax.random.split(key, 2 * self.nl)
        self.weights, self.biases = [], []
        for i, c in enumerate(ch):
            bound = 1.0 / math.sqrt(c)
            w = jax.random.uniform(keys[2 * i], (self.na * self.no, c),
                                   minval=-bound, maxval=bound, dtype=jnp.float32)
            b = jax.random.uniform(keys[2 * i + 1], (self.na * self.no,),
                                   minval=-bound, maxval=bound, dtype=jnp.float32)
            self.weights.append(w)
            self.biases.append(b)
        self.block_name = "detect"

    def get_block_name(self):
        return self.block_name

    def __call__(self, xs, first_run=False, calc_metric=False):
        mode = "raw" if first_run else ("metric" if calc_metric else "decode")
        z, x_out = [], []
        for i in range(self.nl):
            stride_i = float(self.stride[i]) if self.stride is not None else 1.0
            xo, zi = detect_level(xs[i], self.weights[i], self.biases[i],
                                  self.anchors_py[i], stride_i, self.nc,
                                  mode=mode, compute_dtype=self.compute_dtype)
            x_out.append(xo)
            if zi is not None:
                z.append(zi)
        if first_run:
            return x_out
        # TODO(synk): write each level's z directly into a preallocated
        # (bs, total, no) buffer via input_output_aliases to avoid this concat pass.
        return jnp.concatenate(z, axis=1), x_out


# ---------------------------------------------------------------------------
# Pure-JAX reference (mirrors the PyTorch forward; matmul inputs rounded to the
# kernel's compute dtype so the comparison isolates kernel correctness).
# ---------------------------------------------------------------------------
def detect_reference(xs, weights, biases, anchors, strides, nc,
                     compute_dtype=jnp.bfloat16):
    no = nc + 5
    z, x_out = [], []
    for i, x in enumerate(xs):
        bs, _, ny, nx = x.shape
        w, b = weights[i], biases[i]
        na = w.shape[0] // no
        x_c = x.astype(compute_dtype).astype(jnp.float32)
        w_c = w.astype(compute_dtype).astype(jnp.float32)
        t = jnp.einsum('bchw,oc->bohw', x_c, w_c) + b[None, :, None, None]
        t = t.reshape(bs, na, no, ny, nx).transpose(0, 1, 3, 4, 2)      # (bs,na,ny,nx,no)
        x_out.append(t)
        y = jax.nn.sigmoid(t)
        yv, xv = jnp.meshgrid(jnp.arange(ny), jnp.arange(nx), indexing='ij')
        grid = jnp.stack((xv, yv), axis=2).reshape(1, 1, ny, nx, 2).astype(jnp.float32)
        xy = (y[..., 0:2] * 2.0 - 0.5 + grid) * strides[i]
        wh = (y[..., 2:4] * 2.0) ** 2 * anchors[i].reshape(1, na, 1, 1, 2)
        y = jnp.concatenate([xy, wh, y[..., 4:]], axis=-1)
        z.append(y.reshape(bs, -1, no))
    return jnp.concatenate(z, axis=1), x_out


if __name__ == "__main__":
    key = jax.random.PRNGKey(0)
    k_param, k0, k1 = jax.random.split(key, 3)

    nc = 80
    anchors = ((10, 13, 16, 30, 33, 23), (30, 61, 62, 45, 59, 119))   # 2 levels, na=3
    ch = (16, 32)
    det = Detect(nc=nc, anchors=anchors, ch=ch, key=k_param)
    det.stride = (8.0, 16.0)

    bs = 2
    x0 = jax.random.normal(k0, (bs, ch[0], 16, 16), dtype=jnp.float32)
    x1 = jax.random.normal(k1, (bs, ch[1], 8, 8), dtype=jnp.float32)
    xs = [x0, x1]

    z_ref, x_ref = detect_reference(xs, det.weights, det.biases, det.anchors,
                                    det.stride, nc)

    # --- inference (decode) path ---
    z, x_out = det(xs)
    z = jax.block_until_ready(z)
    x_out = [jax.block_until_ready(t) for t in x_out]

    total = det.na * (16 * 16 + 8 * 8)
    assert z.shape == (bs, total, det.no), z.shape
    for i in range(det.nl):
        assert x_out[i].shape == x_ref[i].shape, (x_out[i].shape, x_ref[i].shape)
        assert bool(jnp.allclose(x_out[i], x_ref[i], atol=5e-3, rtol=5e-3))
    assert bool(jnp.allclose(z, z_ref, atol=5e-3, rtol=5e-3))

    # --- first_run path (raw head output only; z never computed/written) ---
    x_raw = det(xs, first_run=True)
    for i in range(det.nl):
        xr = jax.block_until_ready(x_raw[i])
        assert bool(jnp.allclose(xr, x_ref[i], atol=5e-3, rtol=5e-3))

    # --- calc_metric path (sigmoid emitted directly by the kernel) ---
    z_m, _ = det(xs, calc_metric=True)
    z_m = jax.block_until_ready(z_m)
    z_m_ref = jnp.concatenate(
        [jax.nn.sigmoid(x_ref[i]).reshape(bs, -1, det.no) for i in range(det.nl)],
        axis=1)
    assert bool(jnp.allclose(z_m, z_m_ref, atol=5e-3, rtol=5e-3))

    print("KERNEL_OK")
</pallas_src>

<mosaic_0001>
module attributes {stable_mosaic.version = 11 : i64} {
  func.func @kernel(%arg0: i32, %arg1: i32, %arg2: memref<1x256x16xbf16, #tpu.memory_space<vmem>>, %arg3: memref<16x384xbf16, #tpu.memory_space<vmem>>, %arg4: memref<1x384xf32, #tpu.memory_space<vmem>>, %arg5: memref<1x3x256x85xf32, #tpu.memory_space<vmem>>, %arg6: memref<1x3x256x85xf32, #tpu.memory_space<vmem>>) attributes {dimension_semantics = [#tpu.dimension_semantics<parallel>, #tpu.dimension_semantics<parallel>], iteration_bounds = array<i64: 2, 1>, scalar_prefetch = 0 : i64, scratch_operands = 0 : i64, tpu.core_type = #tpu.core_type<tc>, window_params = [{transform_indices = @transform_0, window_bounds = array<i64: 1, 256, 16>}, {pipeline_mode = #tpu.pipeline_mode<synchronous>, transform_indices = @transform_1, window_bounds = array<i64: 16, 384>}, {pipeline_mode = #tpu.pipeline_mode<synchronous>, transform_indices = @transform_2, window_bounds = array<i64: 1, 384>}, {transform_indices = @transform_3, window_bounds = array<i64: 1, 3, 256, 85>}, {transform_indices = @transform_4, window_bounds = array<i64: 1, 3, 256, 85>}]} {
    %c0 = arith.constant 0 : index
    %c0_0 = arith.constant 0 : index
    %c0_1 = arith.constant 0 : index
    %0 = vector.load %arg2[%c0, %c0_0, %c0_1] : memref<1x256x16xbf16, #tpu.memory_space<vmem>>, vector<1x256x16xbf16>
    %1 = vector.shape_cast %0 : vector<1x256x16xbf16> to vector<256x16xbf16>
    %c0_2 = arith.constant 0 : index
    %c0_3 = arith.constant 0 : index
    %2 = vector.load %arg3[%c0_2, %c0_3] : memref<16x384xbf16, #tpu.memory_space<vmem>>, vector<16x384xbf16>
    %cst = arith.constant dense<0.000000e+00> : vector<256x384xf32>
    %3 = tpu.matmul %1, %2, %cst {dimension_numbers = #tpu.dot_dimension_numbers<[1], [0], [0], [1], [0, 0, 1, 1], [], []>} : vector<256x16xbf16>, vector<16x384xbf16>, vector<256x384xf32> -> vector<256x384xf32>
    %c0_4 = arith.constant 0 : index
    %c0_5 = arith.constant 0 : index
    %4 = vector.load %arg4[%c0_4, %c0_5] : memref<1x384xf32, #tpu.memory_space<vmem>>, vector<1x384xf32>
    %5 = vector.broadcast %4 : vector<1x384xf32> to vector<256x384xf32>
    %6 = arith.addf %3, %5 : vector<256x384xf32>
    %7 = tpu.iota {dimensions = array<i32: 0>} : vector<256x1xi32>
    %c256_i32 = arith.constant 256 : i32
    %8 = arith.muli %arg1, %c256_i32 : i32
    %9 = vector.broadcast %8 : i32 to vector<256x1xi32>
    %10 = arith.addi %7, %9 : vector<256x1xi32>
    %11 = arith.sitofp %10 : vector<256x1xi32> to vector<256x1xf32>
    %cst_6 = arith.constant 1.600000e+01 : f32
    %12 = vector.broadcast %cst_6 : f32 to vector<256x1xf32>
    %13 = arith.divf %11, %12 : vector<256x1xf32>
    %14 = math.floor %13 : vector<256x1xf32>
    %cst_7 = arith.constant 1.600000e+01 : f32
    %15 = vector.broadcast %cst_7 : f32 to vector<256x1xf32>
    %16 = arith.mulf %14, %15 : vector<256x1xf32>
    %17 = arith.subf %11, %16 : vector<256x1xf32>
    %18 = tpu.iota {dimensions = array<i32: 1>} : vector<256x85xi32>
    %c0_i32 = arith.constant 0 : i32
    %19 = vector.broadcast %c0_i32 : i32 to vector<256x85xi32>
    %20 = arith.cmpi eq, %18, %19 : vector<256x85xi32>
    %21 = vector.shape_cast %17 : vector<256x1xf32> to vector<256x1xf32>
    %22 = vector.broadcast %21 : vector<256x1xf32> to vector<256x85xf32>
    %23 = vector.shape_cast %14 : vector<256x1xf32> to vector<256x1xf32>
    %24 = vector.broadcast %23 : vector<256x1xf32> to vector<256x85xf32>
    %25 = arith.select %20, %22, %24 : vector<256x85xi1>, vector<256x85xf32>
    %cst_8 = arith.constant 8.000000e+00 : f32
    %26 = vector.broadcast %cst_8 : f32 to vector<256x85xf32>
    %27 = arith.mulf %25, %26 : vector<256x85xf32>
    %cst_9 = arith.constant 4.000000e+00 : f32
    %28 = vector.broadcast %cst_9 : f32 to vector<256x85xf32>
    %29 = arith.subf %27, %28 : vector<256x85xf32>
    %30 = vector.extract_strided_slice %6 {offsets = [0, 0], sizes = [256, 85], strides = [1, 1]} : vector<256x384xf32> to vector<256x85xf32>
    %c0_10 = arith.constant 0 : index
    %c0_11 = arith.constant 0 : index
    %c0_12 = arith.constant 0 : index
    %c0_13 = arith.constant 0 : index
    %31 = vector.load %arg5[%c0_10, %c0_11, %c0_12, %c0_13] : memref<1x3x256x85xf32, #tpu.memory_space<vmem>>, vector<1x1x256x85xf32>
    %32 = vector.shape_cast %31 : vector<1x1x256x85xf32> to vector<256x85xf32>
    %33 = vector.shape_cast %30 : vector<256x85xf32> to vector<1x1x256x85xf32>
    tpu.vector_store %arg5[%c0_10, %c0_11, %c0_12, %c0_13], %33 {strides = array<i32>} : memref<1x3x256x85xf32, #tpu.memory_space<vmem>>, vector<1x1x256x85xf32>,
    %cst_14 = arith.constant 5.000000e-01 : f32
    %34 = vector.broadcast %cst_14 : f32 to vector<256x85xf32>
    %35 = arith.mulf %34, %30 : vector<256x85xf32>
    %36 = math.tanh %35 : vector<256x85xf32>
    %cst_15 = arith.constant 5.000000e-01 : f32
    %37 = vector.broadcast %cst_15 : f32 to vector<256x85xf32>
    %38 = arith.mulf %37, %36 : vector<256x85xf32>
    %cst_16 = arith.constant 5.000000e-01 : f32
    %39 = vector.broadcast %cst_16 : f32 to vector<256x85xf32>
    %40 = arith.addf %38, %39 : vector<256x85xf32>
    %cst_17 = arith.constant 1.600000e+01 : f32
    %41 = vector.broadcast %cst_17 : f32 to vector<256x85xf32>
    %42 = arith.mulf %40, %41 : vector<256x85xf32>
    %43 = arith.addf %42, %29 : vector<256x85xf32>
    %cst_18 = arith.constant 2.000000e+00 : f32
    %44 = vector.broadcast %cst_18 : f32 to vector<256x85xf32>
    %45 = arith.mulf %40, %44 : vector<256x85xf32>
    %46 = arith.mulf %45, %45 : vector<256x85xf32>
    %c2_i32 = arith.constant 2 : i32
    %47 = vector.broadcast %c2_i32 : i32 to vector<256x85xi32>
    %48 = arith.cmpi eq, %18, %47 : vector<256x85xi32>
    %cst_19 = arith.constant 1.000000e+01 : f32
    %cst_20 = arith.constant 1.300000e+01 : f32
    %49 = vector.broadcast %cst_19 : f32 to vector<256x85xf32>
    %50 = vector.broadcast %cst_20 : f32 to vector<256x85xf32>
    %51 = arith.select %48, %49, %50 : vector<256x85xi1>, vector<256x85xf32>
    %52 = arith.mulf %46, %51 : vector<256x85xf32>
    %c2_i32_21 = arith.constant 2 : i32
    %53 = vector.broadcast %c2_i32_21 : i32 to vector<256x85xi32>
    %54 = arith.cmpi slt, %18, %53 : vector<256x85xi32>
    %c4_i32 = arith.constant 4 : i32
    %55 = vector.broadcast %c4_i32 : i32 to vector<256x85xi32>
    %56 = arith.cmpi slt, %18, %55 : vector<256x85xi32>
    %57 = arith.select %56, %52, %40 : vector<256x85xi1>, vector<256x85xf32>
    %58 = arith.select %54, %43, %57 : vector<256x85xi1>, vector<256x85xf32>
    %c0_22 = arith.constant 0 : index
    %c0_23 = arith.constant 0 : index
    %c0_24 = arith.constant 0 : index
    %c0_25 = arith.constant 0 : index
    %59 = vector.load %arg6[%c0_22, %c0_23, %c0_24, %c0_25] : memref<1x3x256x85xf32, #tpu.memory_space<vmem>>, vector<1x1x256x85xf32>
    %60 = vector.shape_cast %59 : vector<1x1x256x85xf32> to vector<256x85xf32>
    %61 = vector.shape_cast %58 : vector<256x85xf32> to vector<1x1x256x85xf32>
    tpu.vector_store %arg6[%c0_22, %c0_23, %c0_24, %c0_25], %61 {strides = array<i32>} : memref<1x3x256x85xf32, #tpu.memory_space<vmem>>, vector<1x1x256x85xf32>,
    %62 = vector.extract_strided_slice %6 {offsets = [0, 128], sizes = [256, 85], strides = [1, 1]} : vector<256x384xf32> to vector<256x85xf32>
    %c0_26 = arith.constant 0 : index
    %c1 = arith.constant 1 : index
    %c0_27 = arith.constant 0 : index
    %c0_28 = arith.constant 0 : index
    %63 = vector.load %arg5[%c0_26, %c1, %c0_27, %c0_28] : memref<1x3x256x85xf32, #tpu.memory_space<vmem>>, vector<1x1x256x85xf32>
    %64 = vector.shape_cast %63 : vector<1x1x256x85xf32> to vector<256x85xf32>
    %65 = vector.shape_cast %62 : vector<256x85xf32> to vector<1x1x256x85xf32>
    tpu.vector_store %arg5[%c0_26, %c1, %c0_27, %c0_28], %65 {strides = array<i32>} : memref<1x3x256x85xf32, #tpu.memory_space<vmem>>, vector<1x1x256x85xf32>,
    %cst_29 = arith.constant 5.000000e-01 : f32
    %66 = vector.broadcast %cst_29 : f32 to vector<256x85xf32>
    %67 = arith.mulf %66, %62 : vector<256x85xf32>
    %68 = math.tanh %67 : vector<256x85xf32>
    %cst_30 = arith.constant 5.000000e-01 : f32
    %69 = vector.broadcast %cst_30 : f32 to vector<256x85xf32>
    %70 = arith.mulf %69, %68 : vector<256x85xf32>
    %cst_31 = arith.constant 5.000000e-01 : f32
    %71 = vector.broadcast %cst_31 : f32 to vector<256x85xf32>
    %72 = arith.addf %70, %71 : vector<256x85xf32>
    %cst_32 = arith.constant 1.600000e+01 : f32
    %73 = vector.broadcast %cst_32 : f32 to vector<256x85xf32>
    %74 = arith.mulf %72, %73 : vector<256x85xf32>
    %75 = arith.addf %74, %29 : vector<256x85xf32>
    %cst_33 = arith.constant 2.000000e+00 : f32
    %76 = vector.broadcast %cst_33 : f32 to vector<256x85xf32>
    %77 = arith.mulf %72, %76 : vector<256x85xf32>
    %78 = arith.mulf %77, %77 : vector<256x85xf32>
    %c2_i32_34 = arith.constant 2 : i32
    %79 = vector.broadcast %c2_i32_34 : i32 to vector<256x85xi32>
    %80 = arith.cmpi eq, %18, %79 : vector<256x85xi32>
    %cst_35 = arith.constant 1.600000e+01 : f32
    %cst_36 = arith.constant 3.000000e+01 : f32
    %81 = vector.broadcast %cst_35 : f32 to vector<256x85xf32>
    %82 = vector.broadcast %cst_36 : f32 to vector<256x85xf32>
    %83 = arith.select %80, %81, %82 : vector<256x85xi1>, vector<256x85xf32>
    %84 = arith.mulf %78, %83 : vector<256x85xf32>
    %c2_i32_37 = arith.constant 2 : i32
    %85 = vector.broadcast %c2_i32_37 : i32 to vector<256x85xi32>
    %86 = arith.cmpi slt, %18, %85 : vector<256x85xi32>
    %c4_i32_38 = arith.constant 4 : i32
    %87 = vector.broadcast %c4_i32_38 : i32 to vector<256x85xi32>
    %88 = arith.cmpi slt, %18, %87 : vector<256x85xi32>
    %89 = arith.select %88, %84, %72 : vector<256x85xi1>, vector<256x85xf32>
    %90 = arith.select %86, %75, %89 : vector<256x85xi1>, vector<256x85xf32>
    %c0_39 = arith.constant 0 : index
    %c1_40 = arith.constant 1 : index
    %c0_41 = arith.constant 0 : index
    %c0_42 = arith.constant 0 : index
    %91 = vector.load %arg6[%c0_39, %c1_40, %c0_41, %c0_42] : memref<1x3x256x85xf32, #tpu.memory_space<vmem>>, vector<1x1x256x85xf32>
    %92 = vector.shape_cast %91 : vector<1x1x256x85xf32> to vector<256x85xf32>
    %93 = vector.shape_cast %90 : vector<256x85xf32> to vector<1x1x256x85xf32>
    tpu.vector_store %arg6[%c0_39, %c1_40, %c0_41, %c0_42], %93 {strides = array<i32>} : memref<1x3x256x85xf32, #tpu.memory_space<vmem>>, vector<1x1x256x85xf32>,
    %94 = vector.extract_strided_slice %6 {offsets = [0, 256], sizes = [256, 85], strides = [1, 1]} : vector<256x384xf32> to vector<256x85xf32>
    %c0_43 = arith.constant 0 : index
    %c2 = arith.constant 2 : index
    %c0_44 = arith.constant 0 : index
    %c0_45 = arith.constant 0 : index
    %95 = vector.load %arg5[%c0_43, %c2, %c0_44, %c0_45] : memref<1x3x256x85xf32, #tpu.memory_space<vmem>>, vector<1x1x256x85xf32>
    %96 = vector.shape_cast %95 : vector<1x1x256x85xf32> to vector<256x85xf32>
    %97 = vector.shape_cast %94 : vector<256x85xf32> to vector<1x1x256x85xf32>
    tpu.vector_store %arg5[%c0_43, %c2, %c0_44, %c0_45], %97 {strides = array<i32>} : memref<1x3x256x85xf32, #tpu.memory_space<vmem>>, vector<1x1x256x85xf32>,
    %cst_46 = arith.constant 5.000000e-01 : f32
    %98 = vector.broadcast %cst_46 : f32 to vector<256x85xf32>
    %99 = arith.mulf %98, %94 : vector<256x85xf32>
    %100 = math.tanh %99 : vector<256x85xf32>
    %cst_47 = arith.constant 5.000000e-01 : f32
    %101 = vector.broadcast %cst_47 : f32 to vector<256x85xf32>
    %102 = arith.mulf %101, %100 : vector<256x85xf32>
    %cst_48 = arith.constant 5.000000e-01 : f32
    %103 = vector.broadcast %cst_48 : f32 to vector<256x85xf32>
    %104 = arith.addf %102, %103 : vector<256x85xf32>
    %cst_49 = arith.constant 1.600000e+01 : f32
    %105 = vector.broadcast %cst_49 : f32 to vector<256x85xf32>
    %106 = arith.mulf %104, %105 : vector<256x85xf32>
    %107 = arith.addf %106, %29 : vector<256x85xf32>
    %cst_50 = arith.constant 2.000000e+00 : f32
    %108 = vector.broadcast %cst_50 : f32 to vector<256x85xf32>
    %109 = arith.mulf %104, %108 : vector<256x85xf32>
    %110 = arith.mulf %109, %109 : vector<256x85xf32>
    %c2_i32_51 = arith.constant 2 : i32
    %111 = vector.broadcast %c2_i32_51 : i32 to vector<256x85xi32>
    %112 = arith.cmpi eq, %18, %111 : vector<256x85xi32>
    %cst_52 = arith.constant 3.300000e+01 : f32
    %cst_53 = arith.constant 2.300000e+01 : f32
    %113 = vector.broadcast %cst_52 : f32 to vector<256x85xf32>
    %114 = vector.broadcast %cst_53 : f32 to vector<256x85xf32>
    %115 = arith.select %112, %113, %114 : vector<256x85xi1>, vector<256x85xf32>
    %116 = arith.mulf %110, %115 : vector<256x85xf32>
    %c2_i32_54 = arith.constant 2 : i32
    %117 = vector.broadcast %c2_i32_54 : i32 to vector<256x85xi32>
    %118 = arith.cmpi slt, %18, %117 : vector<256x85xi32>
    %c4_i32_55 = arith.constant 4 : i32
    %119 = vector.broadcast %c4_i32_55 : i32 to vector<256x85xi32>
    %120 = arith.cmpi slt, %18, %119 : vector<256x85xi32>
    %121 = arith.select %120, %116, %104 : vector<256x85xi1>, vector<256x85xf32>
    %122 = arith.select %118, %107, %121 : vector<256x85xi1>, vector<256x85xf32>
    %c0_56 = arith.constant 0 : index
    %c2_57 = arith.constant 2 : index
    %c0_58 = arith.constant 0 : index
    %c0_59 = arith.constant 0 : index
    %123 = vector.load %arg6[%c0_56, %c2_57, %c0_58, %c0_59] : memref<1x3x256x85xf32, #tpu.memory_space<vmem>>, vector<1x1x256x85xf32>
    %124 = vector.shape_cast %123 : vector<1x1x256x85xf32> to vector<256x85xf32>
    %125 = vector.shape_cast %122 : vector<256x85xf32> to vector<1x1x256x85xf32>
    tpu.vector_store %arg6[%c0_56, %c2_57, %c0_58, %c0_59], %125 {strides = array<i32>} : memref<1x3x256x85xf32, #tpu.memory_space<vmem>>, vector<1x1x256x85xf32>,
    return
  }
  func.func @transform_0(%arg0: i32, %arg1: i32) -> (i32, i32, i32) {
    %c0_i32 = arith.constant 0 : i32
    %c0_i32_0 = arith.constant 0 : i32
    return %arg0, %arg1, %c0_i32 : i32, i32, i32
  }
  func.func @transform_1(%arg0: i32, %arg1: i32) -> (i32, i32) {
    %c0_i32 = arith.constant 0 : i32
    %c0_i32_0 = arith.constant 0 : i32
    %c0_i32_1 = arith.constant 0 : i32
    return %c0_i32, %c0_i32_0 : i32, i32
  }
  func.func @transform_2(%arg0: i32, %arg1: i32) -> (i32, i32) {
    %c0_i32 = arith.constant 0 : i32
    %c0_i32_0 = arith.constant 0 : i32
    %c0_i32_1 = arith.constant 0 : i32
    return %c0_i32, %c0_i32_0 : i32, i32
  }
  func.func @transform_3(%arg0: i32, %arg1: i32) -> (i32, i32, i32, i32) {
    %c0_i32 = arith.constant 0 : i32
    %c0_i32_0 = arith.constant 0 : i32
    %c0_i32_1 = arith.constant 0 : i32
    return %arg0, %c0_i32, %arg1, %c0_i32_0 : i32, i32, i32, i32
  }
  func.func @transform_4(%arg0: i32, %arg1: i32) -> (i32, i32, i32, i32) {
    %c0_i32 = arith.constant 0 : i32
    %c0_i32_0 = arith.constant 0 : i32
    %c0_i32_1 = arith.constant 0 : i32
    return %arg0, %c0_i32, %arg1, %c0_i32_0 : i32, i32, i32, i32
  }
}

</mosaic_0001>

<llo_original>
// kernel: tpu_custom_call.1
$region0: #{tpu_custom_call.1}
  #allocation0 [shape = 'u32[]', space=smem, size = 0x4, offset = 0x4, fixed_abs, tag = 'smem constant byte address 0x4 - core index']
  #allocation1 [shape = 'u32[144,128]{1,0:T(1,128)}', space=vmem, size = 0x12000, scoped, tag = 'internal scratch']
  %s0 = inlined_call_operand.vmem [shape: bf16[2,256,16], index: 0, kind: input, shape index: {}]
  %s1 = inlined_call_operand.vmem [shape: bf16[16,384], index: 1, kind: input, shape index: {}]
  %s2 = inlined_call_operand.vmem [shape: f32[1,384], index: 2, kind: input, shape index: {}]
  %s3 = inlined_call_operand.vmem [shape: f32[2,3,256,85], index: 3, kind: output, shape index: {0}]
  %s4 = inlined_call_operand.vmem [shape: f32[2,3,256,85], index: 4, kind: output, shape index: {1}]
  %5 = xla_tuple %s3, %s4
  %s6 = sld [smem:[#allocation0]]
  $region53: #{tpu_custom_call.1} parent=0
    _
  %s8 = ssub.s32 1, %s6
  %s9 = scalar_select 0, %s8, %s6
  loop: start=0, step=1, limit=4
  $region2: #{tpu_custom_call.1} parent=0 // loop_pre_header
    _
  $region3: #{tpu_custom_call.1} parent=0 // loop_header
    %s11 = sphi 0, %s15
    %p12 = scmp.ge.s32.totalorder %s11, 4
    %s18 = sphi 0, %s30
    %s19 = sphi 0, %s26
    %s20 = sphi 0, %s18
    %s21 = sphi 0, %s19
    %s22 = sphi 0, %s20
    %s23 = sphi 0, %s21
    %s35 = sphi 0, %s37
    %s38 = sphi 0, %s35
    %s39 = sphi 0, %s38
    %s55 = sphi 0, %s39
    %s59 = sphi 0, %s59
    %s61 = sphi 0, %s59
    %s62 = sphi 0, %s61
    %s76 = sphi 0, %s62
    %s80 = sphi 0, %s80
    %s82 = sphi 0, %s80
    %s83 = sphi 0, %s82
    %s97 = sphi 0, %s83
    %s105 = sphi 0, %s107
    %s108 = sphi 0, %s105
    %s109 = sphi 0, %s108
    %s125 = sphi 0, %s109
    %s133 = sphi 0, %s135
    %s136 = sphi 0, %s133
    %s137 = sphi 0, %s136
    %s153 = sphi 0, %s137
  $region4: #{tpu_custom_call.1} parent=0 // loop_header_branch
    %14 = sbr.rel (%p12) target = $region8
  $region5: #{tpu_custom_call.1} parent=0 // loop_body
    %s16 = ssub.s32 %s11, 1
    %s17 = ssub.s32 %s11, 2
    %s24 = sadd.s32 1, %s19
    %p25 = scmp.ge.s32.totalorder %s24, 1
    %s26 = scalar_select %p25, 0, %s24
    %s27 = sadd.s32 1, %s18
    %s28 = scalar_select %p25, %s27, %s18
    %p29 = scmp.ge.s32.totalorder %s28, 2
    %s30 = scalar_select %p29, 0, %s28
    %s31 = ssub.s32 %s18, %s30
    %s32 = ssub.s32 %s19, %s26
    %s33 = sor.u32 %s31, %s32
    %p34 = scmp.eq.s32.totalorder %s33, 0
    %s36 = sadd.s32 %s35, 1
    %s37 = scalar_select %p34, %s35, %s36
    %p40 = pneg %p34
    %p41 = scmp.eq.s32.totalorder %s11, 1
    %p42 = por %p40, %p41
    %p43 = scmp.ne.s32.totalorder %s35, %s38
    %p44 = scmp.eq.s32.totalorder %s11, 0
    %p45 = por %p43, %p44
    %p46 = scmp.ne.s32.totalorder %s35, %s38
    %p47 = scmp.eq.s32.totalorder %s16, 1
    %p48 = por %p46, %p47
    %p49 = scmp.ne.s32.totalorder %s38, %s39
    %p50 = scmp.eq.s32.totalorder %s16, 0
    %p51 = por %p49, %p50
    %p52 = scmp.ne.s32.totalorder %s38, %s39
    %p53 = scmp.eq.s32.totalorder %s17, 1
    %p54 = por %p52, %p53
    %p56 = scmp.ne.s32.totalorder %s39, %s55
    %p57 = scmp.eq.s32.totalorder %s17, 0
    %p58 = por %p56, %p57
    %s60 = sadd.s32 %s59, 1
    %p63 = scmp.eq.s32.totalorder %s11, 1
    %p64 = scmp.ne.s32.totalorder %s59, %s61
    %p65 = scmp.eq.s32.totalorder %s11, 0
    %p66 = por %p64, %p65
    %p67 = scmp.ne.s32.totalorder %s59, %s61
    %p68 = scmp.eq.s32.totalorder %s16, 1
    %p69 = por %p67, %p68
    %p70 = scmp.ne.s32.totalorder %s61, %s62
    %p71 = scmp.eq.s32.totalorder %s16, 0
    %p72 = por %p70, %p71
    %p73 = scmp.ne.s32.totalorder %s61, %s62
    %p74 = scmp.eq.s32.totalorder %s17, 1
    %p75 = por %p73, %p74
    %p77 = scmp.ne.s32.totalorder %s62, %s76
    %p78 = scmp.eq.s32.totalorder %s17, 0
    %p79 = por %p77, %p78
    %s81 = sadd.s32 %s80, 1
    %p84 = scmp.eq.s32.totalorder %s11, 1
    %p85 = scmp.ne.s32.totalorder %s80, %s82
    %p86 = scmp.eq.s32.totalorder %s11, 0
    %p87 = por %p85, %p86
    %p88 = scmp.ne.s32.totalorder %s80, %s82
    %p89 = scmp.eq.s32.totalorder %s16, 1
    %p90 = por %p88, %p89
    %p91 = scmp.ne.s32.totalorder %s82, %s83
    %p92 = scmp.eq.s32.totalorder %s16, 0
    %p93 = por %p91, %p92
    %p94 = scmp.ne.s32.totalorder %s82, %s83
    %p95 = scmp.eq.s32.totalorder %s17, 1
    %p96 = por %p94, %p95
    %p98 = scmp.ne.s32.totalorder %s83, %s97
    %p99 = scmp.eq.s32.totalorder %s17, 0
    %p100 = por %p98, %p99
    %s101 = ssub.s32 %s18, %s30
    %s102 = ssub.s32 %s19, %s26
    %s103 = sor.u32 %s101, %s102
    %p104 = scmp.eq.s32.totalorder %s103, 0
    %s106 = sadd.s32 %s105, 1
    %s107 = scalar_select %p104, %s105, %s106
    %p110 = pneg %p104
    %p111 = scmp.eq.s32.totalorder %s11, 1
    %p112 = por %p110, %p111
    %p113 = scmp.ne.s32.totalorder %s105, %s108
    %p114 = scmp.eq.s32.totalorder %s11, 0
    %p115 = por %p113, %p114
    %p116 = scmp.ne.s32.totalorder %s105, %s108
    %p117 = scmp.eq.s32.totalorder %s16, 1
    %p118 = por %p116, %p117
    %p119 = scmp.ne.s32.totalorder %s108, %s109
    %p120 = scmp.eq.s32.totalorder %s16, 0
    %p121 = por %p119, %p120
    %p122 = scmp.ne.s32.totalorder %s108, %s109
    %p123 = scmp.eq.s32.totalorder %s17, 1
    %p124 = por %p122, %p123
    %p126 = scmp.ne.s32.totalorder %s109, %s125
    %p127 = scmp.eq.s32.totalorder %s17, 0
    %p128 = por %p126, %p127
    %s129 = ssub.s32 %s18, %s30
    %s130 = ssub.s32 %s19, %s26
    %s131 = sor.u32 %s129, %s130
    %p132 = scmp.eq.s32.totalorder %s131, 0
    %s134 = sadd.s32 %s133, 1
    %s135 = scalar_select %p132, %s133, %s134
    %p138 = pneg %p132
    %p139 = scmp.eq.s32.totalorder %s11, 1
    %p140 = por %p138, %p139
    %p141 = scmp.ne.s32.totalorder %s133, %s136
    %p142 = scmp.eq.s32.totalorder %s11, 0
    %p143 = por %p141, %p142
    %p144 = scmp.ne.s32.totalorder %s133, %s136
    %p145 = scmp.eq.s32.totalorder %s16, 1
    %p146 = por %p144, %p145
    %p147 = scmp.ne.s32.totalorder %s136, %s137
    %p148 = scmp.eq.s32.totalorder %s16, 0
    %p149 = por %p147, %p148
    %p150 = scmp.ne.s32.totalorder %s136, %s137
    %p151 = scmp.eq.s32.totalorder %s17, 1
    %p152 = por %p150, %p151
    %p154 = scmp.ne.s32.totalorder %s137, %s153
    %p155 = scmp.eq.s32.totalorder %s17, 0
    %p156 = por %p154, %p155
    %p157 = scmp.le.s32.totalorder 1, %s11
    %p158 = scmp.lt.s32.totalorder %s11, 3
    %p159 = pnand %p157, %p158
    %p160 = pneg %p159
    // Predicated region
    $region9: #{tpu_custom_call.1} parent=5 // pred_check
      _
    $region10: #{tpu_custom_call.1} parent=5 // pred_check_branch
      %162 = sbr.rel (%p159) target = $region12
    $region11: #{tpu_custom_call.1} parent=5 // pred_region
      %s163 = ssub.s32 %s11, 1
      // Predicated region
      $region13: #{tpu_custom_call.1} parent=11 // pred_check
        %p164 = pneg %p72
      $region14: #{tpu_custom_call.1} parent=11 // pred_check_branch
        %166 = sbr.rel (%p164) target = $region16
      $region15: #{tpu_custom_call.1} parent=11 // pred_region
        _
      $region16: #{tpu_custom_call.1} parent=11 // pred_fallthru
        _
      // Predicated region
      $region17: #{tpu_custom_call.1} parent=11 // pred_check
        %p167 = pneg %p93
      $region18: #{tpu_custom_call.1} parent=11 // pred_check_branch
        %169 = sbr.rel (%p167) target = $region20
      $region19: #{tpu_custom_call.1} parent=11 // pred_region
        _
      $region20: #{tpu_custom_call.1} parent=11 // pred_fallthru
        _
    $region12: #{tpu_custom_call.1} parent=5 // pred_fallthru
      _
    %p170 = scmp.lt.s32.totalorder %s11, 2
    // Predicated region
    $region21: #{tpu_custom_call.1} parent=5 // pred_check
      %p171 = pneg %p170
    $region22: #{tpu_custom_call.1} parent=5 // pred_check_branch
      %173 = sbr.rel (%p171) target = $region24
    $region23: #{tpu_custom_call.1} parent=5 // pred_region
      // Predicated region
      $region25: #{tpu_custom_call.1} parent=23 // pred_check
        %p174 = pneg %p45
      $region26: #{tpu_custom_call.1} parent=23 // pred_check_branch
        %176 = sbr.rel (%p174) target = $region28
      $region27: #{tpu_custom_call.1} parent=23 // pred_region
        %s177 = smul.u32 32, %s19
        %p178 = scmp.lt.s32.totalorder %s18, 1
        %s179 = scalar_select %p178, %s18, 1
        %p180 = scmp.lt.s32.totalorder %s177, 31
        %s181 = scalar_select %p180, %s177, 31
        %s182 = smul.addr %s179, 32
        %s183 = sadd.s32 %s181, %s182
        %s184 = smul.addr %s183, 4
        %s185 = scalar_lea.vmem %s0, %s184
        %s186 = smul.u32 32, %s19
      $region28: #{tpu_custom_call.1} parent=23 // pred_fallthru
        _
    $region24: #{tpu_custom_call.1} parent=5 // pred_fallthru
      _
    %p187 = scmp.le.s32.totalorder 1, %s11
    %p188 = scmp.lt.s32.totalorder %s11, 3
    %p189 = pnand %p187, %p188
    %p190 = pneg %p189
    // Predicated region
    $region29: #{tpu_custom_call.1} parent=5 // pred_check
      _
    $region30: #{tpu_custom_call.1} parent=5 // pred_check_branch
      %192 = sbr.rel (%p189) target = $region32
    $region31: #{tpu_custom_call.1} parent=5 // pred_region
      %s193 = ssub.s32 %s11, 1
      %s194 = smul.u32 32, %s21
      %p195 = scmp.lt.s32.totalorder %s20, 1
      %s196 = scalar_select %p195, %s20, 1
      %p197 = scmp.lt.s32.totalorder %s194, 31
      %s198 = scalar_select %p197, %s194, 31
      %s199 = smul.addr %s196, 32
      %s200 = sadd.s32 %s198, %s199
      %s201 = smul.addr %s200, 4
      %s202 = scalar_lea.vmem %s0, %s201
      %p203 = pneg %p51
      %p204 = pneg %p48
      %p205 = pneg %p72
      %p206 = pneg %p69
      %p207 = pneg %p93
      %p208 = pneg %p90
      %p209 = pneg %p121
      %p210 = pneg %p118
      %s211 = smul.u32 32, %s21
      %p212 = scmp.lt.s32.totalorder %s20, 1
      %s213 = scalar_select %p212, %s20, 1
      %p214 = scmp.lt.s32.totalorder %s211, 31
      %s215 = scalar_select %p214, %s211, 31
      %s216 = smul.addr %s213, 96
      %s217 = sadd.s32 %s215, %s216
      %s218 = smul.addr %s217, 8
      %s219 = scalar_lea.vmem %s3, %s218
      %p220 = pneg %p149
      %p221 = pneg %p146
      %s222 = smul.u32 32, %s21
      %p223 = scmp.lt.s32.totalorder %s20, 1
      %s224 = scalar_select %p223, %s20, 1
      %p225 = scmp.lt.s32.totalorder %s222, 31
      %s226 = scalar_select %p225, %s222, 31
      %s227 = smul.addr %s224, 96
      %s228 = sadd.s32 %s226, %s227
      %s229 = smul.addr %s228, 8
      %s230 = scalar_lea.vmem %s4, %s229
      %s231 = smul.u32 32, %s21
      %p232 = scmp.lt.s32.totalorder %s20, 1
      %s233 = scalar_select %p232, %s20, 1
      %p234 = scmp.lt.s32.totalorder %s231, 31
      %s235 = scalar_select %p234, %s231, 31
      %s236 = smul.addr %s233, 32
      %s237 = sadd.s32 %s235, %s236
      %s238 = smul.addr %s237, 4
      %s239 = scalar_lea.vmem %s0, %s238
      %s240 = smul.u32 32, %s21
      %s241 = smul.u32 32, %s21
      %p242 = scmp.lt.s32.totalorder %s20, 1
      %s243 = scalar_select %p242, %s20, 1
      %p244 = scmp.lt.s32.totalorder %s241, 31
      %s245 = scalar_select %p244, %s241, 31
      %s246 = smul.addr %s243, 96
      %s247 = sadd.s32 %s245, %s246
      %s248 = smul.addr %s247, 8
      %s249 = scalar_lea.vmem %s3, %s248
      %s250 = smul.u32 32, %s21
      %s251 = smul.u32 32, %s21
      %p252 = scmp.lt.s32.totalorder %s20, 1
      %s253 = scalar_select %p252, %s20, 1
      %p254 = scmp.lt.s32.totalorder %s251, 31
      %s255 = scalar_select %p254, %s251, 31
      %s256 = smul.addr %s253, 96
      %s257 = sadd.s32 %s255, %s256
      %s258 = smul.addr %s257, 8
      %s259 = scalar_lea.vmem %s4, %s258
      %s260 = smul.u32 32, %s21
      %v262 = vld [vmem:[%s239] sm:$0xf]
      %v263 = vld [vmem:[%s239 + $0x4] sm:$0xf]
      %v264 = vld [vmem:[%s239 + $0x8] sm:$0xf]
      %v265 = vld [vmem:[%s239 + $0xc] sm:$0xf]
      %v266 = vld [vmem:[%s239 + $0x10] sm:$0xf]
      %v267 = vld [vmem:[%s239 + $0x14] sm:$0xf]
      %v268 = vld [vmem:[%s239 + $0x18] sm:$0xf]
      %v269 = vld [vmem:[%s239 + $0x1c] sm:$0xf]
      %v270 = vld [vmem:[%s239 + $0x20] sm:$0xf]
      %v271 = vld [vmem:[%s239 + $0x24] sm:$0xf]
      %v272 = vld [vmem:[%s239 + $0x28] sm:$0xf]
      %v273 = vld [vmem:[%s239 + $0x2c] sm:$0xf]
      %v274 = vld [vmem:[%s239 + $0x30] sm:$0xf]
      %v275 = vld [vmem:[%s239 + $0x34] sm:$0xf]
      %v276 = vld [vmem:[%s239 + $0x38] sm:$0xf]
      %v277 = vld [vmem:[%s239 + $0x3c] sm:$0xf]
      %v278 = vld [vmem:[%s239 + $0x40] sm:$0xf]
      %v279 = vld [vmem:[%s239 + $0x44] sm:$0xf]
      %v280 = vld [vmem:[%s239 + $0x48] sm:$0xf]
      %v281 = vld [vmem:[%s239 + $0x4c] sm:$0xf]
      %v282 = vld [vmem:[%s239 + $0x50] sm:$0xf]
      %v283 = vld [vmem:[%s239 + $0x54] sm:$0xf]
      %v284 = vld [vmem:[%s239 + $0x58] sm:$0xf]
      %v285 = vld [vmem:[%s239 + $0x5c] sm:$0xf]
      %v286 = vld [vmem:[%s239 + $0x60] sm:$0xf]
      %v287 = vld [vmem:[%s239 + $0x64] sm:$0xf]
      %v288 = vld [vmem:[%s239 + $0x68] sm:$0xf]
      %v289 = vld [vmem:[%s239 + $0x6c] sm:$0xf]
      %v290 = vld [vmem:[%s239 + $0x70] sm:$0xf]
      %v291 = vld [vmem:[%s239 + $0x74] sm:$0xf]
      %v292 = vld [vmem:[%s239 + $0x78] sm:$0xf]
      %v293 = vld [vmem:[%s239 + $0x7c] sm:$0xf]
      %v294 = vld [vmem:[%s1] sm:$0xff]
      %v295 = vld [vmem:[%s1 + $0x8] sm:$0xf]
      %v296 = vld [vmem:[%s1 + $0xc] sm:$0xff]
      %v297 = vld [vmem:[%s1 + $0x14] sm:$0xf]
      %v298 = vld [vmem:[%s2] sm:$0x7]
      %v300 = vlaneseq
      %v301 = vshrl.u32 %v300, 7
      %v302 = vsub.s32 0, %v301
      %v303 = vrot.slane %v298, %v302
      %v304 = vlaneseq
      %v305 = vshrl.u32 %v304, 7
      %v306 = vsub.s32 1, %v305
      %v307 = vrot.slane %v298, %v306
      %v308 = vlaneseq
      %v309 = vshrl.u32 %v308, 7
      %v310 = vsub.s32 2, %v309
      %v311 = vrot.slane %v298, %v310
      %v347 = vunpack.c.l.b16 %v262
      %v348 = vunpack.c.l.b16 %v263
      %v349 = vunpack.c.l.b16 %v264
      %v350 = vunpack.c.l.b16 %v265
      %v351 = vunpack.c.l.b16 %v266
      %v352 = vunpack.c.l.b16 %v267
      %v353 = vunpack.c.l.b16 %v268
      %v354 = vunpack.c.l.b16 %v269
      %v355 = vunpack.c.l.b16 %v270
      %v356 = vunpack.c.l.b16 %v271
      %v357 = vunpack.c.l.b16 %v272
      %v358 = vunpack.c.l.b16 %v273
      %v359 = vunpack.c.l.b16 %v274
      %v360 = vunpack.c.l.b16 %v275
      %v361 = vunpack.c.l.b16 %v276
      %v362 = vunpack.c.l.b16 %v277
      %v363 = vunpack.c.l.b16 %v278
      %v364 = vunpack.c.l.b16 %v279
      %v365 = vunpack.c.l.b16 %v280
      %v366 = vunpack.c.l.b16 %v281
      %v367 = vunpack.c.l.b16 %v282
      %v368 = vunpack.c.l.b16 %v283
      %v369 = vunpack.c.l.b16 %v284
      %v370 = vunpack.c.l.b16 %v285
      %v371 = vunpack.c.l.b16 %v286
      %v372 = vunpack.c.l.b16 %v287
      %v373 = vunpack.c.l.b16 %v288
      %v374 = vunpack.c.l.b16 %v289
      %v375 = vunpack.c.l.b16 %v290
      %v376 = vunpack.c.l.b16 %v291
      %v377 = vunpack.c.l.b16 %v292
      %v378 = vunpack.c.l.b16 %v293
      %v379 = vpack.c.b16 %v348, %v347
      %v380 = vpack.c.b16 %v350, %v349
      %v381 = vpack.c.b16 %v352, %v351
      %v382 = vpack.c.b16 %v354, %v353
      %v383 = vpack.c.b16 %v356, %v355
      %v384 = vpack.c.b16 %v358, %v357
      %v385 = vpack.c.b16 %v360, %v359
      %v386 = vpack.c.b16 %v362, %v361
      %v387 = vpack.c.b16 %v364, %v363
      %v388 = vpack.c.b16 %v366, %v365
      %v389 = vpack.c.b16 %v368, %v367
      %v390 = vpack.c.b16 %v370, %v369
      %v391 = vpack.c.b16 %v372, %v371
      %v392 = vpack.c.b16 %v374, %v373
      %v393 = vpack.c.b16 %v376, %v375
      %v394 = vpack.c.b16 %v378, %v377
      %v399 = vunpack.c.l.b16 %v294
      %v400 = vunpack.c.h.b16 %v294
      %v401 = vunpack.c.l.b16 %v295
      %v402 = vunpack.c.l.b16 %v296
      %v403 = vunpack.c.h.b16 %v296
      %v404 = vunpack.c.l.b16 %v297
      %v405 = vpack.c.b16 %v402, %v399
      %v406 = vpack.c.b16 %v403, %v400
      %v407 = vpack.c.b16 %v404, %v401
      %vm411 = vcmask 130048
      %v413 = vsel %vm411, %v379, 0
      %v416 = vsel %vm411, %v380, 0
      %v419 = vsel %vm411, %v381, 0
      %v422 = vsel %vm411, %v382, 0
      %v425 = vsel %vm411, %v383, 0
      %v428 = vsel %vm411, %v384, 0
      %v431 = vsel %vm411, %v385, 0
      %v434 = vsel %vm411, %v386, 0
      %v437 = vsel %vm411, %v387, 0
      %v440 = vsel %vm411, %v388, 0
      %v443 = vsel %vm411, %v389, 0
      %v446 = vsel %vm411, %v390, 0
      %v449 = vsel %vm411, %v391, 0
      %v452 = vsel %vm411, %v392, 0
      %v455 = vsel %vm411, %v393, 0
      %v458 = vsel %vm411, %v394, 0
      %460 = vmatprep.subr.bf16.mxu0 %v406
      %461 = vmatpush1.bf16.msra.mxu0 %v405
      %462 = vmatprep.subr.bf16.mxu0 0
      %463 = vmatpush1.bf16.msra.mxu0 0
      %464 = vmatprep.subr.bf16.mxu0 0
      %465 = vmatpush1.bf16.msra.mxu0 0
      %466 = vmatprep.subr.bf16.mxu0 0
      %467 = vmatpush1.bf16.msra.mxu0 0
      %468 = vmatprep.subr.bf16.mxu0 0
      %469 = vmatpush1.bf16.msra.mxu0 0
      %470 = vmatprep.subr.bf16.mxu0 0
      %471 = vmatpush1.bf16.msra.mxu0 0
      %472 = vmatprep.subr.bf16.mxu0 0
      %473 = vmatpush1.bf16.msra.mxu0 0
      %474 = vmatprep.subr.bf16.mxu0 0
      %475 = vmatpush1.bf16.msra.mxu0 0
      %476 = vmatprep.subr.bf16.mxu0 0
      %477 = vmatpush1.bf16.msra.mxu0 0
      %478 = vmatprep.subr.bf16.mxu0 0
      %479 = vmatpush1.bf16.msra.mxu0 0
      %480 = vmatprep.subr.bf16.mxu0 0
      %481 = vmatpush1.bf16.msra.mxu0 0
      %482 = vmatprep.subr.bf16.mxu0 0
      %483 = vmatpush1.bf16.msra.mxu0 0
      %484 = vmatprep.subr.bf16.mxu0 0
      %485 = vmatpush1.bf16.msra.mxu0 0
      %486 = vmatprep.subr.bf16.mxu0 0
      %487 = vmatpush1.bf16.msra.mxu0 0
      %488 = vmatprep.subr.bf16.mxu0 0
      %489 = vmatpush1.bf16.msra.mxu0 0
      %490 = vmatprep.subr.bf16.mxu0 0
      %491 = vmatpush1.bf16.msra.mxu0 0
      %492 = vmatprep.mubr.bf16.mxu0 0
      %493 = vmatmul.mubr.bf16.gmra.mrb[0].mxu0 %v413
      %v494 = vpop.f32.mrb[0].mxu0
      %v495 = vadd.f32 %v303, %v494
      %v496 = vpop.f32.mrb[0].mxu0
      %v497 = vadd.f32 %v307, %v496
      %v498 = vpop.f32.mrb[0].mxu0
      %v499 = vadd.f32 %v303, %v498
      %v500 = vpop.f32.mrb[0].mxu0
      %v501 = vadd.f32 %v307, %v500
      %502 = vmatprep.mubr.bf16.mxu0 0
      %503 = vmatmul.mubr.bf16.gmra.mrb[0].mxu0 %v416
      %v504 = vpop.f32.mrb[0].mxu0
      %v505 = vadd.f32 %v303, %v504
      %v506 = vpop.f32.mrb[0].mxu0
      %v507 = vadd.f32 %v307, %v506
      %v508 = vpop.f32.mrb[0].mxu0
      %v509 = vadd.f32 %v303, %v508
      %v510 = vpop.f32.mrb[0].mxu0
      %v511 = vadd.f32 %v307, %v510
      %512 = vmatprep.mubr.bf16.mxu0 0
      %513 = vmatmul.mubr.bf16.gmra.mrb[0].mxu0 %v419
      %v514 = vpop.f32.mrb[0].mxu0
      %v515 = vadd.f32 %v303, %v514
      %v516 = vpop.f32.mrb[0].mxu0
      %v517 = vadd.f32 %v307, %v516
      %v518 = vpop.f32.mrb[0].mxu0
      %v519 = vadd.f32 %v303, %v518
      %v520 = vpop.f32.mrb[0].mxu0
      %v521 = vadd.f32 %v307, %v520
      %522 = vmatprep.mubr.bf16.mxu0 0
      %523 = vmatmul.mubr.bf16.gmra.mrb[0].mxu0 %v422
      %v524 = vpop.f32.mrb[0].mxu0
      %v525 = vadd.f32 %v303, %v524
      %v526 = vpop.f32.mrb[0].mxu0
      %v527 = vadd.f32 %v307, %v526
      %v528 = vpop.f32.mrb[0].mxu0
      %v529 = vadd.f32 %v303, %v528
      %v530 = vpop.f32.mrb[0].mxu0
      %v531 = vadd.f32 %v307, %v530
      %532 = vmatprep.mubr.bf16.mxu0 0
      %533 = vmatmul.mubr.bf16.gmra.mrb[0].mxu0 %v425
      %v534 = vpop.f32.mrb[0].mxu0
      %v535 = vadd.f32 %v303, %v534
      %v536 = vpop.f32.mrb[0].mxu0
      %v537 = vadd.f32 %v307, %v536
      %v538 = vpop.f32.mrb[0].mxu0
      %v539 = vadd.f32 %v303, %v538
      %v540 = vpop.f32.mrb[0].mxu0
      %v541 = vadd.f32 %v307, %v540
      %542 = vmatprep.mubr.bf16.mxu0 0
      %543 = vmatmul.mubr.bf16.gmra.mrb[0].mxu0 %v428
      %v544 = vpop.f32.mrb[0].mxu0
      %v545 = vadd.f32 %v303, %v544
      %v546 = vpop.f32.mrb[0].mxu0
      %v547 = vadd.f32 %v307, %v546
      %v548 = vpop.f32.mrb[0].mxu0
      %v549 = vadd.f32 %v303, %v548
      %v550 = vpop.f32.mrb[0].mxu0
      %v551 = vadd.f32 %v307, %v550
      %552 = vmatprep.mubr.bf16.mxu0 0
      %553 = vmatmul.mubr.bf16.gmra.mrb[0].mxu0 %v431
      %v554 = vpop.f32.mrb[0].mxu0
      %v555 = vadd.f32 %v303, %v554
      %v556 = vpop.f32.mrb[0].mxu0
      %v557 = vadd.f32 %v307, %v556
      %v558 = vpop.f32.mrb[0].mxu0
      %v559 = vadd.f32 %v303, %v558
      %v560 = vpop.f32.mrb[0].mxu0
      %v561 = vadd.f32 %v307, %v560
      %562 = vmatprep.mubr.bf16.mxu0 0
      %563 = vmatmul.mubr.bf16.gmra.mrb[0].mxu0 %v434
      %v564 = vpop.f32.mrb[0].mxu0
      %v565 = vadd.f32 %v303, %v564
      %v566 = vpop.f32.mrb[0].mxu0
      %v567 = vadd.f32 %v307, %v566
      %v568 = vpop.f32.mrb[0].mxu0
      %v569 = vadd.f32 %v303, %v568
      %v570 = vpop.f32.mrb[0].mxu0
      %v571 = vadd.f32 %v307, %v570
      %572 = vmatprep.mubr.bf16.mxu0 0
      %573 = vmatmul.mubr.bf16.gmra.mrb[0].mxu0 %v437
      %v574 = vpop.f32.mrb[0].mxu0
      %v575 = vadd.f32 %v303, %v574
      %v576 = vpop.f32.mrb[0].mxu0
      %v577 = vadd.f32 %v307, %v576
      %v578 = vpop.f32.mrb[0].mxu0
      %v579 = vadd.f32 %v303, %v578
      %v580 = vpop.f32.mrb[0].mxu0
      %v581 = vadd.f32 %v307, %v580
      %582 = vmatprep.mubr.bf16.mxu0 0
      %583 = vmatmul.mubr.bf16.gmra.mrb[0].mxu0 %v440
      %v584 = vpop.f32.mrb[0].mxu0
      %v585 = vadd.f32 %v303, %v584
      %v586 = vpop.f32.mrb[0].mxu0
      %v587 = vadd.f32 %v307, %v586
      %v588 = vpop.f32.mrb[0].mxu0
      %v589 = vadd.f32 %v303, %v588
      %v590 = vpop.f32.mrb[0].mxu0
      %v591 = vadd.f32 %v307, %v590
      %592 = vmatprep.mubr.bf16.mxu0 0
      %593 = vmatmul.mubr.bf16.gmra.mrb[0].mxu0 %v443
      %v594 = vpop.f32.mrb[0].mxu0
      %v595 = vadd.f32 %v303, %v594
      %v596 = vpop.f32.mrb[0].mxu0
      %v597 = vadd.f32 %v307, %v596
      %v598 = vpop.f32.mrb[0].mxu0
      %v599 = vadd.f32 %v303, %v598
      %v600 = vpop.f32.mrb[0].mxu0
      %v601 = vadd.f32 %v307, %v600
      %602 = vmatprep.mubr.bf16.mxu0 0
      %603 = vmatmul.mubr.bf16.gmra.mrb[0].mxu0 %v446
      %v604 = vpop.f32.mrb[0].mxu0
      %v605 = vadd.f32 %v303, %v604
      %v606 = vpop.f32.mrb[0].mxu0
      %v607 = vadd.f32 %v307, %v606
      %v608 = vpop.f32.mrb[0].mxu0
      %v609 = vadd.f32 %v303, %v608
      %v610 = vpop.f32.mrb[0].mxu0
      %v611 = vadd.f32 %v307, %v610
      %612 = vmatprep.mubr.bf16.mxu0 0
      %613 = vmatmul.mubr.bf16.gmra.mrb[0].mxu0 %v449
      %v614 = vpop.f32.mrb[0].mxu0
      %v615 = vadd.f32 %v303, %v614
      %v616 = vpop.f32.mrb[0].mxu0
      %v617 = vadd.f32 %v307, %v616
      %v618 = vpop.f32.mrb[0].mxu0
      %v619 = vadd.f32 %v303, %v618
      %v620 = vpop.f32.mrb[0].mxu0
      %v621 = vadd.f32 %v307, %v620
      %622 = vmatprep.mubr.bf16.mxu0 0
      %623 = vmatmul.mubr.bf16.gmra.mrb[0].mxu0 %v452
      %v624 = vpop.f32.mrb[0].mxu0
      %v625 = vadd.f32 %v303, %v624
      %v626 = vpop.f32.mrb[0].mxu0
      %v627 = vadd.f32 %v307, %v626
      %v628 = vpop.f32.mrb[0].mxu0
      %v629 = vadd.f32 %v303, %v628
      %v630 = vpop.f32.mrb[0].mxu0
      %v631 = vadd.f32 %v307, %v630
      %632 = vmatprep.mubr.bf16.mxu0 0
      %633 = vmatmul.mubr.bf16.gmra.mrb[0].mxu0 %v455
      %v634 = vpop.f32.mrb[0].mxu0
      %v635 = vadd.f32 %v303, %v634
      %v636 = vpop.f32.mrb[0].mxu0
      %v637 = vadd.f32 %v307, %v636
      %v638 = vpop.f32.mrb[0].mxu0
      %v639 = vadd.f32 %v303, %v638
      %v640 = vpop.f32.mrb[0].mxu0
      %v641 = vadd.f32 %v307, %v640
      %642 = vmatprep.mubr.bf16.mxu0 0
      %643 = vmatmul.mubr.bf16.gmra.mrb[0].mxu0 %v458
      %v644 = vpop.f32.mrb[0].mxu0
      %v645 = vadd.f32 %v303, %v644
      %v646 = vpop.f32.mrb[0].mxu0
      %v647 = vadd.f32 %v307, %v646
      %v648 = vpop.f32.mrb[0].mxu0
      %v649 = vadd.f32 %v303, %v648
      %v650 = vpop.f32.mrb[0].mxu0
      %v651 = vadd.f32 %v307, %v650
      %652 = vdwg.mxu0
      %653 = vmatprep.subr.bf16.mxu0 0
      %654 = vmatpush1.bf16.msra.mxu0 %v407
      %655 = vmatprep.subr.bf16.mxu0 0
      %656 = vmatpush1.bf16.msra.mxu0 0
      %657 = vmatprep.subr.bf16.mxu0 0
      %658 = vmatpush1.bf16.msra.mxu0 0
      %659 = vmatprep.subr.bf16.mxu0 0
      %660 = vmatpush1.bf16.msra.mxu0 0
      %661 = vmatprep.subr.bf16.mxu0 0
      %662 = vmatpush1.bf16.msra.mxu0 0
      %663 = vmatprep.subr.bf16.mxu0 0
      %664 = vmatpush1.bf16.msra.mxu0 0
      %665 = vmatprep.subr.bf16.mxu0 0
      %666 = vmatpush1.bf16.msra.mxu0 0
      %667 = vmatprep.subr.bf16.mxu0 0
      %668 = vmatpush1.bf16.msra.mxu0 0
      %669 = vmatprep.subr.bf16.mxu0 0
      %670 = vmatpush1.bf16.msra.mxu0 0
      %671 = vmatprep.subr.bf16.mxu0 0
      %672 = vmatpush1.bf16.msra.mxu0 0
      %673 = vmatprep.subr.bf16.mxu0 0
      %674 = vmatpush1.bf16.msra.mxu0 0
      %675 = vmatprep.subr.bf16.mxu0 0
      %676 = vmatpush1.bf16.msra.mxu0 0
      %677 = vmatprep.subr.bf16.mxu0 0
      %678 = vmatpush1.bf16.msra.mxu0 0
      %679 = vmatprep.subr.bf16.mxu0 0
      %680 = vmatpush1.bf16.msra.mxu0 0
      %681 = vmatprep.subr.bf16.mxu0 0
      %682 = vmatpush1.bf16.msra.mxu0 0
      %683 = vmatprep.subr.bf16.mxu0 0
      %684 = vmatpush1.bf16.msra.mxu0 0
      %685 = vmatprep.mubr.bf16.mxu0 0
      %686 = vmatmul.mubr.bf16.gmra.mrb[0].mxu0 %v413
      %v687 = vpop.f32.mrb[0].mxu0
      %v688 = vadd.f32 %v311, %v687
      %v689 = vpop.f32.mrb[0].mxu0
      %v690 = vpop.f32.mrb[0].mxu0
      %v691 = vadd.f32 %v311, %v690
      %v692 = vpop.f32.mrb[0].mxu0
      %693 = vmatprep.mubr.bf16.mxu0 0
      %694 = vmatmul.mubr.bf16.gmra.mrb[0].mxu0 %v416
      %v695 = vpop.f32.mrb[0].mxu0
      %v696 = vadd.f32 %v311, %v695
      %v697 = vpop.f32.mrb[0].mxu0
      %v698 = vpop.f32.mrb[0].mxu0
      %v699 = vadd.f32 %v311, %v698
      %v700 = vpop.f32.mrb[0].mxu0
      %701 = vmatprep.mubr.bf16.mxu0 0
      %702 = vmatmul.mubr.bf16.gmra.mrb[0].mxu0 %v419
      %v703 = vpop.f32.mrb[0].mxu0
      %v704 = vadd.f32 %v311, %v703
      %v705 = vpop.f32.mrb[0].mxu0
      %v706 = vpop.f32.mrb[0].mxu0
      %v707 = vadd.f32 %v311, %v706
      %v708 = vpop.f32.mrb[0].mxu0
      %709 = vmatprep.mubr.bf16.mxu0 0
      %710 = vmatmul.mubr.bf16.gmra.mrb[0].mxu0 %v422
      %v711 = vpop.f32.mrb[0].mxu0
      %v712 = vadd.f32 %v311, %v711
      %v713 = vpop.f32.mrb[0].mxu0
      %v714 = vpop.f32.mrb[0].mxu0
      %v715 = vadd.f32 %v311, %v714
      %v716 = vpop.f32.mrb[0].mxu0
      %717 = vmatprep.mubr.bf16.mxu0 0
      %718 = vmatmul.mubr.bf16.gmra.mrb[0].mxu0 %v425
      %v719 = vpop.f32.mrb[0].mxu0
      %v720 = vadd.f32 %v311, %v719
      %v721 = vpop.f32.mrb[0].mxu0
      %v722 = vpop.f32.mrb[0].mxu0
      %v723 = vadd.f32 %v311, %v722
      %v724 = vpop.f32.mrb[0].mxu0
      %725 = vmatprep.mubr.bf16.mxu0 0
      %726 = vmatmul.mubr.bf16.gmra.mrb[0].mxu0 %v428
      %v727 = vpop.f32.mrb[0].mxu0
      %v728 = vadd.f32 %v311, %v727
      %v729 = vpop.f32.mrb[0].mxu0
      %v730 = vpop.f32.mrb[0].mxu0
      %v731 = vadd.f32 %v311, %v730
      %v732 = vpop.f32.mrb[0].mxu0
      %733 = vmatprep.mubr.bf16.mxu0 0
      %734 = vmatmul.mubr.bf16.gmra.mrb[0].mxu0 %v431
      %v735 = vpop.f32.mrb[0].mxu0
      %v736 = vadd.f32 %v311, %v735
      %v737 = vpop.f32.mrb[0].mxu0
      %v738 = vpop.f32.mrb[0].mxu0
      %v739 = vadd.f32 %v311, %v738
      %v740 = vpop.f32.mrb[0].mxu0
      %741 = vmatprep.mubr.bf16.mxu0 0
      %742 = vmatmul.mubr.bf16.gmra.mrb[0].mxu0 %v434
      %v743 = vpop.f32.mrb[0].mxu0
      %v744 = vadd.f32 %v311, %v743
      %v745 = vpop.f32.mrb[0].mxu0
      %v746 = vpop.f32.mrb[0].mxu0
      %v747 = vadd.f32 %v311, %v746
      %v748 = vpop.f32.mrb[0].mxu0
      %749 = vmatprep.mubr.bf16.mxu0 0
      %750 = vmatmul.mubr.bf16.gmra.mrb[0].mxu0 %v437
      %v751 = vpop.f32.mrb[0].mxu0
      %v752 = vadd.f32 %v311, %v751
      %v753 = vpop.f32.mrb[0].mxu0
      %v754 = vpop.f32.mrb[0].mxu0
      %v755 = vadd.f32 %v311, %v754
      %v756 = vpop.f32.mrb[0].mxu0
      %757 = vmatprep.mubr.bf16.mxu0 0
      %758 = vmatmul.mubr.bf16.gmra.mrb[0].mxu0 %v440
      %v759 = vpop.f32.mrb[0].mxu0
      %v760 = vadd.f32 %v311, %v759
      %v761 = vpop.f32.mrb[0].mxu0
      %v762 = vpop.f32.mrb[0].mxu0
      %v763 = vadd.f32 %v311, %v762
      %v764 = vpop.f32.mrb[0].mxu0
      %765 = vmatprep.mubr.bf16.mxu0 0
      %766 = vmatmul.mubr.bf16.gmra.mrb[0].mxu0 %v443
      %v767 = vpop.f32.mrb[0].mxu0
      %v768 = vadd.f32 %v311, %v767
      %v769 = vpop.f32.mrb[0].mxu0
      %v770 = vpop.f32.mrb[0].mxu0
      %v771 = vadd.f32 %v311, %v770
      %v772 = vpop.f32.mrb[0].mxu0
      %773 = vmatprep.mubr.bf16.mxu0 0
      %774 = vmatmul.mubr.bf16.gmra.mrb[0].mxu0 %v446
      %v775 = vpop.f32.mrb[0].mxu0
      %v776 = vadd.f32 %v311, %v775
      %v777 = vpop.f32.mrb[0].mxu0
      %v778 = vpop.f32.mrb[0].mxu0
      %v779 = vadd.f32 %v311, %v778
      %v780 = vpop.f32.mrb[0].mxu0
      %781 = vmatprep.mubr.bf16.mxu0 0
      %782 = vmatmul.mubr.bf16.gmra.mrb[0].mxu0 %v449
      %v783 = vpop.f32.mrb[0].mxu0
      %v784 = vadd.f32 %v311, %v783
      %v785 = vpop.f32.mrb[0].mxu0
      %v786 = vpop.f32.mrb[0].mxu0
      %v787 = vadd.f32 %v311, %v786
      %v788 = vpop.f32.mrb[0].mxu0
      %789 = vmatprep.mubr.bf16.mxu0 0
      %790 = vmatmul.mubr.bf16.gmra.mrb[0].mxu0 %v452
      %v791 = vpop.f32.mrb[0].mxu0
      %v792 = vadd.f32 %v311, %v791
      %v793 = vpop.f32.mrb[0].mxu0
      %v794 = vpop.f32.mrb[0].mxu0
      %v795 = vadd.f32 %v311, %v794
      %v796 = vpop.f32.mrb[0].mxu0
      %797 = vmatprep.mubr.bf16.mxu0 0
      %798 = vmatmul.mubr.bf16.gmra.mrb[0].mxu0 %v455
      %v799 = vpop.f32.mrb[0].mxu0
      %v800 = vadd.f32 %v311, %v799
      %v801 = vpop.f32.mrb[0].mxu0
      %v802 = vpop.f32.mrb[0].mxu0
      %v803 = vadd.f32 %v311, %v802
      %v804 = vpop.f32.mrb[0].mxu0
      %805 = vmatprep.mubr.bf16.mxu0 0
      %806 = vmatmul.mubr.bf16.gmra.mrb[0].mxu0 %v458
      %v807 = vpop.f32.mrb[0].mxu0
      %v808 = vadd.f32 %v311, %v807
      %v809 = vpop.f32.mrb[0].mxu0
      %v810 = vpop.f32.mrb[0].mxu0
      %v811 = vadd.f32 %v311, %v810
      %v812 = vpop.f32.mrb[0].mxu0
      %813 = vdwg.mxu0
      %v814 = vlaneseq
      %v815 = vshrl.u32 %v814, 7
      %v816 = vadd.s32 %v815, 8
      %v817 = vadd.s32 %v815, 16
      %v818 = vadd.s32 %v815, 24
      %v819 = vadd.s32 %v815, 32
      %v820 = vadd.s32 %v815, 40
      %v821 = vadd.s32 %v815, 48
      %v822 = vadd.s32 %v815, 56
      %v823 = vadd.s32 %v815, 64
      %v824 = vadd.s32 %v815, 72
      %v825 = vadd.s32 %v815, 80
      %v826 = vadd.s32 %v815, 88
      %v827 = vadd.s32 %v815, 96
      %v828 = vadd.s32 %v815, 104
      %v829 = vadd.s32 %v815, 112
      %v830 = vadd.s32 %v815, 120
      %v831 = vadd.s32 %v815, 128
      %v832 = vadd.s32 %v815, 136
      %v833 = vadd.s32 %v815, 144
      %v834 = vadd.s32 %v815, 152
      %v835 = vadd.s32 %v815, 160
      %v836 = vadd.s32 %v815, 168
      %v837 = vadd.s32 %v815, 176
      %v838 = vadd.s32 %v815, 184
      %v839 = vadd.s32 %v815, 192
      %v840 = vadd.s32 %v815, 200
      %v841 = vadd.s32 %v815, 208
      %v842 = vadd.s32 %v815, 216
      %v843 = vadd.s32 %v815, 224
      %v844 = vadd.s32 %v815, 232
      %v845 = vadd.s32 %v815, 240
      %v846 = vadd.s32 %v815, 248
      %s847 = smul.u32 %s21, 256
      %v848 = vstv %s847
      %v849 = vadd.s32 %v815, %v848
      %v850 = vadd.s32 %v816, %v848
      %v851 = vadd.s32 %v817, %v848
      %v852 = vadd.s32 %v818, %v848
      %v853 = vadd.s32 %v819, %v848
      %v854 = vadd.s32 %v820, %v848
      %v855 = vadd.s32 %v821, %v848
      %v856 = vadd.s32 %v822, %v848
      %v857 = vadd.s32 %v823, %v848
      %v858 = vadd.s32 %v824, %v848
      %v859 = vadd.s32 %v825, %v848
      %v860 = vadd.s32 %v826, %v848
      %v861 = vadd.s32 %v827, %v848
      %v862 = vadd.s32 %v828, %v848
      %v863 = vadd.s32 %v829, %v848
      %v864 = vadd.s32 %v830, %v848
      %v865 = vadd.s32 %v831, %v848
      %v866 = vadd.s32 %v832, %v848
      %v867 = vadd.s32 %v833, %v848
      %v868 = vadd.s32 %v834, %v848
      %v869 = vadd.s32 %v835, %v848
      %v870 = vadd.s32 %v836, %v848
      %v871 = vadd.s32 %v837, %v848
      %v872 = vadd.s32 %v838, %v848
      %v873 = vadd.s32 %v839, %v848
      %v874 = vadd.s32 %v840, %v848
      %v875 = vadd.s32 %v841, %v848
      %v876 = vadd.s32 %v842, %v848
      %v877 = vadd.s32 %v843, %v848
      %v878 = vadd.s32 %v844, %v848
      %v879 = vadd.s32 %v845, %v848
      %v880 = vadd.s32 %v846, %v848
      %v881 = vcvt.s32.f32 %v849
      %v882 = vcvt.s32.f32 %v850
      %v883 = vcvt.s32.f32 %v851
      %v884 = vcvt.s32.f32 %v852
      %v885 = vcvt.s32.f32 %v853
      %v886 = vcvt.s32.f32 %v854
      %v887 = vcvt.s32.f32 %v855
      %v888 = vcvt.s32.f32 %v856
      %v889 = vcvt.s32.f32 %v857
      %v890 = vcvt.s32.f32 %v858
      %v891 = vcvt.s32.f32 %v859
      %v892 = vcvt.s32.f32 %v860
      %v893 = vcvt.s32.f32 %v861
      %v894 = vcvt.s32.f32 %v862
      %v895 = vcvt.s32.f32 %v863
      %v896 = vcvt.s32.f32 %v864
      %v897 = vcvt.s32.f32 %v865
      %v898 = vcvt.s32.f32 %v866
      %v899 = vcvt.s32.f32 %v867
      %v900 = vcvt.s32.f32 %v868
      %v901 = vcvt.s32.f32 %v869
      %v902 = vcvt.s32.f32 %v870
      %v903 = vcvt.s32.f32 %v871
      %v904 = vcvt.s32.f32 %v872
      %v905 = vcvt.s32.f32 %v873
      %v906 = vcvt.s32.f32 %v874
      %v907 = vcvt.s32.f32 %v875
      %v908 = vcvt.s32.f32 %v876
      %v909 = vcvt.s32.f32 %v877
      %v910 = vcvt.s32.f32 %v878
      %v911 = vcvt.s32.f32 %v879
      %v912 = vcvt.s32.f32 %v880
      %v913 = vrcp.pop 16.0
      %v914 = vmul.f32 %v881, %v913
      %v915 = vmul.f32 %v882, %v913
      %v916 = vmul.f32 %v883, %v913
      %v917 = vmul.f32 %v884, %v913
      %v918 = vmul.f32 %v885, %v913
      %v919 = vmul.f32 %v886, %v913
      %v920 = vmul.f32 %v887, %v913
      %v921 = vmul.f32 %v888, %v913
      %v922 = vmul.f32 %v889, %v913
      %v923 = vmul.f32 %v890, %v913
      %v924 = vmul.f32 %v891, %v913
      %v925 = vmul.f32 %v892, %v913
      %v926 = vmul.f32 %v893, %v913
      %v927 = vmul.f32 %v894, %v913
      %v928 = vmul.f32 %v895, %v913
      %v929 = vmul.f32 %v896, %v913
      %v930 = vmul.f32 %v897, %v913
      %v931 = vmul.f32 %v898, %v913
      %v932 = vmul.f32 %v899, %v913
      %v933 = vmul.f32 %v900, %v913
      %v934 = vmul.f32 %v901, %v913
      %v935 = vmul.f32 %v902, %v913
      %v936 = vmul.f32 %v903, %v913
      %v937 = vmul.f32 %v904, %v913
      %v938 = vmul.f32 %v905, %v913
      %v939 = vmul.f32 %v906, %v913
      %v940 = vmul.f32 %v907, %v913
      %v941 = vmul.f32 %v908, %v913
      %v942 = vmul.f32 %v909, %v913
      %v943 = vmul.f32 %v910, %v913
      %v944 = vmul.f32 %v911, %v913
      %v945 = vmul.f32 %v912, %v913
      %v946 = vfloor.f32 %v914
      %v947 = vfloor.f32 %v915
      %v948 = vfloor.f32 %v916
      %v949 = vfloor.f32 %v917
      %v950 = vfloor.f32 %v918
      %v951 = vfloor.f32 %v919
      %v952 = vfloor.f32 %v920
      %v953 = vfloor.f32 %v921
      %v954 = vfloor.f32 %v922
      %v955 = vfloor.f32 %v923
      %v956 = vfloor.f32 %v924
      %v957 = vfloor.f32 %v925
      %v958 = vfloor.f32 %v926
      %v959 = vfloor.f32 %v927
      %v960 = vfloor.f32 %v928
      %v961 = vfloor.f32 %v929
      %v962 = vfloor.f32 %v930
      %v963 = vfloor.f32 %v931
      %v964 = vfloor.f32 %v932
      %v965 = vfloor.f32 %v933
      %v966 = vfloor.f32 %v934
      %v967 = vfloor.f32 %v935
      %v968 = vfloor.f32 %v936
      %v969 = vfloor.f32 %v937
      %v970 = vfloor.f32 %v938
      %v971 = vfloor.f32 %v939
      %v972 = vfloor.f32 %v940
      %v973 = vfloor.f32 %v941
      %v974 = vfloor.f32 %v942
      %v975 = vfloor.f32 %v943
      %v976 = vfloor.f32 %v944
      %v977 = vfloor.f32 %v945
      %v978 = vmul.f32 %v946, 16.0
      %v979 = vmul.f32 %v947, 16.0
      %v980 = vmul.f32 %v948, 16.0
      %v981 = vmul.f32 %v949, 16.0
      %v982 = vmul.f32 %v950, 16.0
      %v983 = vmul.f32 %v951, 16.0
      %v984 = vmul.f32 %v952, 16.0
      %v985 = vmul.f32 %v953, 16.0
      %v986 = vmul.f32 %v954, 16.0
      %v987 = vmul.f32 %v955, 16.0
      %v988 = vmul.f32 %v956, 16.0
      %v989 = vmul.f32 %v957, 16.0
      %v990 = vmul.f32 %v958, 16.0
      %v991 = vmul.f32 %v959, 16.0
      %v992 = vmul.f32 %v960, 16.0
      %v993 = vmul.f32 %v961, 16.0
      %v994 = vmul.f32 %v962, 16.0
      %v995 = vmul.f32 %v963, 16.0
      %v996 = vmul.f32 %v964, 16.0
      %v997 = vmul.f32 %v965, 16.0
      %v998 = vmul.f32 %v966, 16.0
      %v999 = vmul.f32 %v967, 16.0
      %v1000 = vmul.f32 %v968, 16.0
      %v1001 = vmul.f32 %v969, 16.0
      %v1002 = vmul.f32 %v970, 16.0
      %v1003 = vmul.f32 %v971, 16.0
      %v1004 = vmul.f32 %v972, 16.0
      %v1005 = vmul.f32 %v973, 16.0
      %v1006 = vmul.f32 %v974, 16.0
      %v1007 = vmul.f32 %v975, 16.0
      %v1008 = vmul.f32 %v976, 16.0
      %v1009 = vmul.f32 %v977, 16.0
      %v1010 = vsub.f32 %v881, %v978
      %v1011 = vsub.f32 %v882, %v979
      %v1012 = vsub.f32 %v883, %v980
      %v1013 = vsub.f32 %v884, %v981
      %v1014 = vsub.f32 %v885, %v982
      %v1015 = vsub.f32 %v886, %v983
      %v1016 = vsub.f32 %v887, %v984
      %v1017 = vsub.f32 %v888, %v985
      %v1018 = vsub.f32 %v889, %v986
      %v1019 = vsub.f32 %v890, %v987
      %v1020 = vsub.f32 %v891, %v988
      %v1021 = vsub.f32 %v892, %v989
      %v1022 = vsub.f32 %v893, %v990
      %v1023 = vsub.f32 %v894, %v991
      %v1024 = vsub.f32 %v895, %v992
      %v1025 = vsub.f32 %v896, %v993
      %v1026 = vsub.f32 %v897, %v994
      %v1027 = vsub.f32 %v898, %v995
      %v1028 = vsub.f32 %v899, %v996
      %v1029 = vsub.f32 %v900, %v997
      %v1030 = vsub.f32 %v901, %v998
      %v1031 = vsub.f32 %v902, %v999
      %v1032 = vsub.f32 %v903, %v1000
      %v1033 = vsub.f32 %v904, %v1001
      %v1034 = vsub.f32 %v905, %v1002
      %v1035 = vsub.f32 %v906, %v1003
      %v1036 = vsub.f32 %v907, %v1004
      %v1037 = vsub.f32 %v908, %v1005
      %v1038 = vsub.f32 %v909, %v1006
      %v1039 = vsub.f32 %v910, %v1007
      %v1040 = vsub.f32 %v911, %v1008
      %v1041 = vsub.f32 %v912, %v1009
      %v1042 = vlaneseq
      %v1043 = vand.u32 %v1042, 127
      %vm1044 = vcmp.eq.s32.totalorder %v1043, 0
      %v1045 = vsel %vm1044, %v1010, %v946
      %v1046 = vsel %vm1044, %v1011, %v947
      %v1047 = vsel %vm1044, %v1012, %v948
      %v1048 = vsel %vm1044, %v1013, %v949
      %v1049 = vsel %vm1044, %v1014, %v950
      %v1050 = vsel %vm1044, %v1015, %v951
      %v1051 = vsel %vm1044, %v1016, %v952
      %v1052 = vsel %vm1044, %v1017, %v953
      %v1053 = vsel %vm1044, %v1018, %v954
      %v1054 = vsel %vm1044, %v1019, %v955
      %v1055 = vsel %vm1044, %v1020, %v956
      %v1056 = vsel %vm1044, %v1021, %v957
      %v1057 = vsel %vm1044, %v1022, %v958
      %v1058 = vsel %vm1044, %v1023, %v959
      %v1059 = vsel %vm1044, %v1024, %v960
      %v1060 = vsel %vm1044, %v1025, %v961
      %v1061 = vsel %vm1044, %v1026, %v962
      %v1062 = vsel %vm1044, %v1027, %v963
      %v1063 = vsel %vm1044, %v1028, %v964
      %v1064 = vsel %vm1044, %v1029, %v965
      %v1065 = vsel %vm1044, %v1030, %v966
      %v1066 = vsel %vm1044, %v1031, %v967
      %v1067 = vsel %vm1044, %v1032, %v968
      %v1068 = vsel %vm1044, %v1033, %v969
      %v1069 = vsel %vm1044, %v1034, %v970
      %v1070 = vsel %vm1044, %v1035, %v971
      %v1071 = vsel %vm1044, %v1036, %v972
      %v1072 = vsel %vm1044, %v1037, %v973
      %v1073 = vsel %vm1044, %v1038, %v974
      %v1074 = vsel %vm1044, %v1039, %v975
      %v1075 = vsel %vm1044, %v1040, %v976
      %v1076 = vsel %vm1044, %v1041, %v977
      %v1077 = vmul.f32 %v1045, 8.0
      %v1078 = vmul.f32 %v1046, 8.0
      %v1079 = vmul.f32 %v1047, 8.0
      %v1080 = vmul.f32 %v1048, 8.0
      %v1081 = vmul.f32 %v1049, 8.0
      %v1082 = vmul.f32 %v1050, 8.0
      %v1083 = vmul.f32 %v1051, 8.0
      %v1084 = vmul.f32 %v1052, 8.0
      %v1085 = vmul.f32 %v1053, 8.0
      %v1086 = vmul.f32 %v1054, 8.0
      %v1087 = vmul.f32 %v1055, 8.0
      %v1088 = vmul.f32 %v1056, 8.0
      %v1089 = vmul.f32 %v1057, 8.0
      %v1090 = vmul.f32 %v1058, 8.0
      %v1091 = vmul.f32 %v1059, 8.0
      %v1092 = vmul.f32 %v1060, 8.0
      %v1093 = vmul.f32 %v1061, 8.0
      %v1094 = vmul.f32 %v1062, 8.0
      %v1095 = vmul.f32 %v1063, 8.0
      %v1096 = vmul.f32 %v1064, 8.0
      %v1097 = vmul.f32 %v1065, 8.0
      %v1098 = vmul.f32 %v1066, 8.0
      %v1099 = vmul.f32 %v1067, 8.0
      %v1100 = vmul.f32 %v1068, 8.0
      %v1101 = vmul.f32 %v1069, 8.0
      %v1102 = vmul.f32 %v1070, 8.0
      %v1103 = vmul.f32 %v1071, 8.0
      %v1104 = vmul.f32 %v1072, 8.0
      %v1105 = vmul.f32 %v1073, 8.0
      %v1106 = vmul.f32 %v1074, 8.0
      %v1107 = vmul.f32 %v1075, 8.0
      %v1108 = vmul.f32 %v1076, 8.0
      %v1109 = vsub.f32 %v1077, 4.0
      %v1110 = vsub.f32 %v1078, 4.0
      %v1111 = vsub.f32 %v1079, 4.0
      %v1112 = vsub.f32 %v1080, 4.0
      %v1113 = vsub.f32 %v1081, 4.0
      %v1114 = vsub.f32 %v1082, 4.0
      %v1115 = vsub.f32 %v1083, 4.0
      %v1116 = vsub.f32 %v1084, 4.0
      %v1117 = vsub.f32 %v1085, 4.0
      %v1118 = vsub.f32 %v1086, 4.0
      %v1119 = vsub.f32 %v1087, 4.0
      %v1120 = vsub.f32 %v1088, 4.0
      %v1121 = vsub.f32 %v1089, 4.0
      %v1122 = vsub.f32 %v1090, 4.0
      %v1123 = vsub.f32 %v1091, 4.0
      %v1124 = vsub.f32 %v1092, 4.0
      %v1125 = vsub.f32 %v1093, 4.0
      %v1126 = vsub.f32 %v1094, 4.0
      %v1127 = vsub.f32 %v1095, 4.0
      %v1128 = vsub.f32 %v1096, 4.0
      %v1129 = vsub.f32 %v1097, 4.0
      %v1130 = vsub.f32 %v1098, 4.0
      %v1131 = vsub.f32 %v1099, 4.0
      %v1132 = vsub.f32 %v1100, 4.0
      %v1133 = vsub.f32 %v1101, 4.0
      %v1134 = vsub.f32 %v1102, 4.0
      %v1135 = vsub.f32 %v1103, 4.0
      %v1136 = vsub.f32 %v1104, 4.0
      %v1137 = vsub.f32 %v1105, 4.0
      %v1138 = vsub.f32 %v1106, 4.0
      %v1139 = vsub.f32 %v1107, 4.0
      %v1140 = vsub.f32 %v1108, 4.0
      %vm1141 = vcmask 695296
      %1142 = vst.msk [vmem:[%s249] sm:$0xff] %vm1141, %v495
      %1143 = vst.msk [vmem:[%s249 + $0x8] sm:$0xff] %vm1141, %v499
      %1144 = vst.msk [vmem:[%s249 + $0x10] sm:$0xff] %vm1141, %v505
      %1145 = vst.msk [vmem:[%s249 + $0x18] sm:$0xff] %vm1141, %v509
      %1146 = vst.msk [vmem:[%s249 + $0x20] sm:$0xff] %vm1141, %v515
      %1147 = vst.msk [vmem:[%s249 + $0x28] sm:$0xff] %vm1141, %v519
      %1148 = vst.msk [vmem:[%s249 + $0x30] sm:$0xff] %vm1141, %v525
      %1149 = vst.msk [vmem:[%s249 + $0x38] sm:$0xff] %vm1141, %v529
      %1150 = vst.msk [vmem:[%s249 + $0x40] sm:$0xff] %vm1141, %v535
      %1151 = vst.msk [vmem:[%s249 + $0x48] sm:$0xff] %vm1141, %v539
      %1152 = vst.msk [vmem:[%s249 + $0x50] sm:$0xff] %vm1141, %v545
      %1153 = vst.msk [vmem:[%s249 + $0x58] sm:$0xff] %vm1141, %v549
      %1154 = vst.msk [vmem:[%s249 + $0x60] sm:$0xff] %vm1141, %v555
      %1155 = vst.msk [vmem:[%s249 + $0x68] sm:$0xff] %vm1141, %v559
      %1156 = vst.msk [vmem:[%s249 + $0x70] sm:$0xff] %vm1141, %v565
      %1157 = vst.msk [vmem:[%s249 + $0x78] sm:$0xff] %vm1141, %v569
      %1158 = vst.msk [vmem:[%s249 + $0x80] sm:$0xff] %vm1141, %v575
      %1159 = vst.msk [vmem:[%s249 + $0x88] sm:$0xff] %vm1141, %v579
      %1160 = vst.msk [vmem:[%s249 + $0x90] sm:$0xff] %vm1141, %v585
      %1161 = vst.msk [vmem:[%s249 + $0x98] sm:$0xff] %vm1141, %v589
      %1162 = vst.msk [vmem:[%s249 + $0xa0] sm:$0xff] %vm1141, %v595
      %1163 = vst.msk [vmem:[%s249 + $0xa8] sm:$0xff] %vm1141, %v599
      %1164 = vst.msk [vmem:[%s249 + $0xb0] sm:$0xff] %vm1141, %v605
      %1165 = vst.msk [vmem:[%s249 + $0xb8] sm:$0xff] %vm1141, %v609
      %1166 = vst.msk [vmem:[%s249 + $0xc0] sm:$0xff] %vm1141, %v615
      %1167 = vst.msk [vmem:[%s249 + $0xc8] sm:$0xff] %vm1141, %v619
      %1168 = vst.msk [vmem:[%s249 + $0xd0] sm:$0xff] %vm1141, %v625
      %1169 = vst.msk [vmem:[%s249 + $0xd8] sm:$0xff] %vm1141, %v629
      %1170 = vst.msk [vmem:[%s249 + $0xe0] sm:$0xff] %vm1141, %v635
      %1171 = vst.msk [vmem:[%s249 + $0xe8] sm:$0xff] %vm1141, %v639
      %1172 = vst.msk [vmem:[%s249 + $0xf0] sm:$0xff] %vm1141, %v645
      %1173 = vst.msk [vmem:[%s249 + $0xf8] sm:$0xff] %vm1141, %v649
      %v1174 = vmul.f32 %v495, 0.5
      %v1175 = vmul.f32 %v499, 0.5
      %v1176 = vmul.f32 %v505, 0.5
      %v1177 = vmul.f32 %v509, 0.5
      %v1178 = vmul.f32 %v515, 0.5
      %v1179 = vmul.f32 %v519, 0.5
      %v1180 = vmul.f32 %v525, 0.5
      %v1181 = vmul.f32 %v529, 0.5
      %v1182 = vmul.f32 %v535, 0.5
      %v1183 = vmul.f32 %v539, 0.5
      %v1184 = vmul.f32 %v545, 0.5
      %v1185 = vmul.f32 %v549, 0.5
      %v1186 = vmul.f32 %v555, 0.5
      %v1187 = vmul.f32 %v559, 0.5
      %v1188 = vmul.f32 %v565, 0.5
      %v1189 = vmul.f32 %v569, 0.5
      %v1190 = vmul.f32 %v575, 0.5
      %v1191 = vmul.f32 %v579, 0.5
      %v1192 = vmul.f32 %v585, 0.5
      %v1193 = vmul.f32 %v589, 0.5
      %v1194 = vmul.f32 %v595, 0.5
      %v1195 = vmul.f32 %v599, 0.5
      %v1196 = vmul.f32 %v605, 0.5
      %v1197 = vmul.f32 %v609, 0.5
      %v1198 = vmul.f32 %v615, 0.5
      %v1199 = vmul.f32 %v619, 0.5
      %v1200 = vmul.f32 %v625, 0.5
      %v1201 = vmul.f32 %v629, 0.5
      %v1202 = vmul.f32 %v635, 0.5
      %v1203 = vmul.f32 %v639, 0.5
      %v1204 = vmul.f32 %v645, 0.5
      %v1205 = vmul.f32 %v649, 0.5
      %v1206 = vtanh.pop %v1174
      %v1207 = vtanh.pop %v1175
      %v1208 = vtanh.pop %v1176
      %v1209 = vtanh.pop %v1177
      %v1210 = vtanh.pop %v1178
      %v1211 = vtanh.pop %v1179
      %v1212 = vtanh.pop %v1180
      %v1213 = vtanh.pop %v1181
      %v1214 = vtanh.pop %v1182
      %v1215 = vtanh.pop %v1183
      %v1216 = vtanh.pop %v1184
      %v1217 = vtanh.pop %v1185
      %v1218 = vtanh.pop %v1186
      %v1219 = vtanh.pop %v1187
      %v1220 = vtanh.pop %v1188
      %v1221 = vtanh.pop %v1189
      %v1222 = vtanh.pop %v1190
      %v1223 = vtanh.pop %v1191
      %v1224 = vtanh.pop %v1192
      %v1225 = vtanh.pop %v1193
      %v1226 = vtanh.pop %v1194
      %v1227 = vtanh.pop %v1195
      %v1228 = vtanh.pop %v1196
      %v1229 = vtanh.pop %v1197
      %v1230 = vtanh.pop %v1198
      %v1231 = vtanh.pop %v1199
      %v1232 = vtanh.pop %v1200
      %v1233 = vtanh.pop %v1201
      %v1234 = vtanh.pop %v1202
      %v1235 = vtanh.pop %v1203
      %v1236 = vtanh.pop %v1204
      %v1237 = vtanh.pop %v1205
      %v1238 = vmul.f32 %v1206, 0.5
      %v1239 = vmul.f32 %v1207, 0.5
      %v1240 = vmul.f32 %v1208, 0.5
      %v1241 = vmul.f32 %v1209, 0.5
      %v1242 = vmul.f32 %v1210, 0.5
      %v1243 = vmul.f32 %v1211, 0.5
      %v1244 = vmul.f32 %v1212, 0.5
      %v1245 = vmul.f32 %v1213, 0.5
      %v1246 = vmul.f32 %v1214, 0.5
      %v1247 = vmul.f32 %v1215, 0.5
      %v1248 = vmul.f32 %v1216, 0.5
      %v1249 = vmul.f32 %v1217, 0.5
      %v1250 = vmul.f32 %v1218, 0.5
      %v1251 = vmul.f32 %v1219, 0.5
      %v1252 = vmul.f32 %v1220, 0.5
      %v1253 = vmul.f32 %v1221, 0.5
      %v1254 = vmul.f32 %v1222, 0.5
      %v1255 = vmul.f32 %v1223, 0.5
      %v1256 = vmul.f32 %v1224, 0.5
      %v1257 = vmul.f32 %v1225, 0.5
      %v1258 = vmul.f32 %v1226, 0.5
      %v1259 = vmul.f32 %v1227, 0.5
      %v1260 = vmul.f32 %v1228, 0.5
      %v1261 = vmul.f32 %v1229, 0.5
      %v1262 = vmul.f32 %v1230, 0.5
      %v1263 = vmul.f32 %v1231, 0.5
      %v1264 = vmul.f32 %v1232, 0.5
      %v1265 = vmul.f32 %v1233, 0.5
      %v1266 = vmul.f32 %v1234, 0.5
      %v1267 = vmul.f32 %v1235, 0.5
      %v1268 = vmul.f32 %v1236, 0.5
      %v1269 = vmul.f32 %v1237, 0.5
      %v1270 = vadd.f32 %v1238, 0.5
      %v1271 = vadd.f32 %v1239, 0.5
      %v1272 = vadd.f32 %v1240, 0.5
      %v1273 = vadd.f32 %v1241, 0.5
      %v1274 = vadd.f32 %v1242, 0.5
      %v1275 = vadd.f32 %v1243, 0.5
      %v1276 = vadd.f32 %v1244, 0.5
      %v1277 = vadd.f32 %v1245, 0.5
      %v1278 = vadd.f32 %v1246, 0.5
      %v1279 = vadd.f32 %v1247, 0.5
      %v1280 = vadd.f32 %v1248, 0.5
      %v1281 = vadd.f32 %v1249, 0.5
      %v1282 = vadd.f32 %v1250, 0.5
      %v1283 = vadd.f32 %v1251, 0.5
      %v1284 = vadd.f32 %v1252, 0.5
      %v1285 = vadd.f32 %v1253, 0.5
      %v1286 = vadd.f32 %v1254, 0.5
      %v1287 = vadd.f32 %v1255, 0.5
      %v1288 = vadd.f32 %v1256, 0.5
      %v1289 = vadd.f32 %v1257, 0.5
      %v1290 = vadd.f32 %v1258, 0.5
      %v1291 = vadd.f32 %v1259, 0.5
      %v1292 = vadd.f32 %v1260, 0.5
      %v1293 = vadd.f32 %v1261, 0.5
      %v1294 = vadd.f32 %v1262, 0.5
      %v1295 = vadd.f32 %v1263, 0.5
      %v1296 = vadd.f32 %v1264, 0.5
      %v1297 = vadd.f32 %v1265, 0.5
      %v1298 = vadd.f32 %v1266, 0.5
      %v1299 = vadd.f32 %v1267, 0.5
      %v1300 = vadd.f32 %v1268, 0.5
      %v1301 = vadd.f32 %v1269, 0.5
      %v1302 = vmul.f32 %v1270, 16.0
      %v1303 = vmul.f32 %v1271, 16.0
      %v1304 = vmul.f32 %v1272, 16.0
      %v1305 = vmul.f32 %v1273, 16.0
      %v1306 = vmul.f32 %v1274, 16.0
      %v1307 = vmul.f32 %v1275, 16.0
      %v1308 = vmul.f32 %v1276, 16.0
      %v1309 = vmul.f32 %v1277, 16.0
      %v1310 = vmul.f32 %v1278, 16.0
      %v1311 = vmul.f32 %v1279, 16.0
      %v1312 = vmul.f32 %v1280, 16.0
      %v1313 = vmul.f32 %v1281, 16.0
      %v1314 = vmul.f32 %v1282, 16.0
      %v1315 = vmul.f32 %v1283, 16.0
      %v1316 = vmul.f32 %v1284, 16.0
      %v1317 = vmul.f32 %v1285, 16.0
      %v1318 = vmul.f32 %v1286, 16.0
      %v1319 = vmul.f32 %v1287, 16.0
      %v1320 = vmul.f32 %v1288, 16.0
      %v1321 = vmul.f32 %v1289, 16.0
      %v1322 = vmul.f32 %v1290, 16.0
      %v1323 = vmul.f32 %v1291, 16.0
      %v1324 = vmul.f32 %v1292, 16.0
      %v1325 = vmul.f32 %v1293, 16.0
      %v1326 = vmul.f32 %v1294, 16.0
      %v1327 = vmul.f32 %v1295, 16.0
      %v1328 = vmul.f32 %v1296, 16.0
      %v1329 = vmul.f32 %v1297, 16.0
      %v1330 = vmul.f32 %v1298, 16.0
      %v1331 = vmul.f32 %v1299, 16.0
      %v1332 = vmul.f32 %v1300, 16.0
      %v1333 = vmul.f32 %v1301, 16.0
      %v1334 = vadd.f32 %v1302, %v1109
      %v1335 = vadd.f32 %v1303, %v1110
      %v1336 = vadd.f32 %v1304, %v1111
      %v1337 = vadd.f32 %v1305, %v1112
      %v1338 = vadd.f32 %v1306, %v1113
      %v1339 = vadd.f32 %v1307, %v1114
      %v1340 = vadd.f32 %v1308, %v1115
      %v1341 = vadd.f32 %v1309, %v1116
      %v1342 = vadd.f32 %v1310, %v1117
      %v1343 = vadd.f32 %v1311, %v1118
      %v1344 = vadd.f32 %v1312, %v1119
      %v1345 = vadd.f32 %v1313, %v1120
      %v1346 = vadd.f32 %v1314, %v1121
      %v1347 = vadd.f32 %v1315, %v1122
      %v1348 = vadd.f32 %v1316, %v1123
      %v1349 = vadd.f32 %v1317, %v1124
      %v1350 = vadd.f32 %v1318, %v1125
      %v1351 = vadd.f32 %v1319, %v1126
      %v1352 = vadd.f32 %v1320, %v1127
      %v1353 = vadd.f32 %v1321, %v1128
      %v1354 = vadd.f32 %v1322, %v1129
      %v1355 = vadd.f32 %v1323, %v1130
      %v1356 = vadd.f32 %v1324, %v1131
      %v1357 = vadd.f32 %v1325, %v1132
      %v1358 = vadd.f32 %v1326, %v1133
      %v1359 = vadd.f32 %v1327, %v1134
      %v1360 = vadd.f32 %v1328, %v1135
      %v1361 = vadd.f32 %v1329, %v1136
      %v1362 = vadd.f32 %v1330, %v1137
      %v1363 = vadd.f32 %v1331, %v1138
      %v1364 = vadd.f32 %v1332, %v1139
      %v1365 = vadd.f32 %v1333, %v1140
      %v1366 = vmul.f32 %v1270, 2.0
      %v1367 = vmul.f32 %v1271, 2.0
      %v1368 = vmul.f32 %v1272, 2.0
      %v1369 = vmul.f32 %v1273, 2.0
      %v1370 = vmul.f32 %v1274, 2.0
      %v1371 = vmul.f32 %v1275, 2.0
      %v1372 = vmul.f32 %v1276, 2.0
      %v1373 = vmul.f32 %v1277, 2.0
      %v1374 = vmul.f32 %v1278, 2.0
      %v1375 = vmul.f32 %v1279, 2.0
      %v1376 = vmul.f32 %v1280, 2.0
      %v1377 = vmul.f32 %v1281, 2.0
      %v1378 = vmul.f32 %v1282, 2.0
      %v1379 = vmul.f32 %v1283, 2.0
      %v1380 = vmul.f32 %v1284, 2.0
      %v1381 = vmul.f32 %v1285, 2.0
      %v1382 = vmul.f32 %v1286, 2.0
      %v1383 = vmul.f32 %v1287, 2.0
      %v1384 = vmul.f32 %v1288, 2.0
      %v1385 = vmul.f32 %v1289, 2.0
      %v1386 = vmul.f32 %v1290, 2.0
      %v1387 = vmul.f32 %v1291, 2.0
      %v1388 = vmul.f32 %v1292, 2.0
      %v1389 = vmul.f32 %v1293, 2.0
      %v1390 = vmul.f32 %v1294, 2.0
      %v1391 = vmul.f32 %v1295, 2.0
      %v1392 = vmul.f32 %v1296, 2.0
      %v1393 = vmul.f32 %v1297, 2.0
      %v1394 = vmul.f32 %v1298, 2.0
      %v1395 = vmul.f32 %v1299, 2.0
      %v1396 = vmul.f32 %v1300, 2.0
      %v1397 = vmul.f32 %v1301, 2.0
      %v1398 = vmul.f32 %v1366, %v1366
      %v1399 = vmul.f32 %v1367, %v1367
      %v1400 = vmul.f32 %v1368, %v1368
      %v1401 = vmul.f32 %v1369, %v1369
      %v1402 = vmul.f32 %v1370, %v1370
      %v1403 = vmul.f32 %v1371, %v1371
      %v1404 = vmul.f32 %v1372, %v1372
      %v1405 = vmul.f32 %v1373, %v1373
      %v1406 = vmul.f32 %v1374, %v1374
      %v1407 = vmul.f32 %v1375, %v1375
      %v1408 = vmul.f32 %v1376, %v1376
      %v1409 = vmul.f32 %v1377, %v1377
      %v1410 = vmul.f32 %v1378, %v1378
      %v1411 = vmul.f32 %v1379, %v1379
      %v1412 = vmul.f32 %v1380, %v1380
      %v1413 = vmul.f32 %v1381, %v1381
      %v1414 = vmul.f32 %v1382, %v1382
      %v1415 = vmul.f32 %v1383, %v1383
      %v1416 = vmul.f32 %v1384, %v1384
      %v1417 = vmul.f32 %v1385, %v1385
      %v1418 = vmul.f32 %v1386, %v1386
      %v1419 = vmul.f32 %v1387, %v1387
      %v1420 = vmul.f32 %v1388, %v1388
      %v1421 = vmul.f32 %v1389, %v1389
      %v1422 = vmul.f32 %v1390, %v1390
      %v1423 = vmul.f32 %v1391, %v1391
      %v1424 = vmul.f32 %v1392, %v1392
      %v1425 = vmul.f32 %v1393, %v1393
      %v1426 = vmul.f32 %v1394, %v1394
      %v1427 = vmul.f32 %v1395, %v1395
      %v1428 = vmul.f32 %v1396, %v1396
      %v1429 = vmul.f32 %v1397, %v1397
      %vm1430 = vcmp.eq.s32.totalorder %v1043, 2
      %v1431 = vsel %vm1430, 10.0, 13.0
      %v1432 = vmul.f32 %v1398, %v1431
      %v1433 = vmul.f32 %v1399, %v1431
      %v1434 = vmul.f32 %v1400, %v1431
      %v1435 = vmul.f32 %v1401, %v1431
      %v1436 = vmul.f32 %v1402, %v1431
      %v1437 = vmul.f32 %v1403, %v1431
      %v1438 = vmul.f32 %v1404, %v1431
      %v1439 = vmul.f32 %v1405, %v1431
      %v1440 = vmul.f32 %v1406, %v1431
      %v1441 = vmul.f32 %v1407, %v1431
      %v1442 = vmul.f32 %v1408, %v1431
      %v1443 = vmul.f32 %v1409, %v1431
      %v1444 = vmul.f32 %v1410, %v1431
      %v1445 = vmul.f32 %v1411, %v1431
      %v1446 = vmul.f32 %v1412, %v1431
      %v1447 = vmul.f32 %v1413, %v1431
      %v1448 = vmul.f32 %v1414, %v1431
      %v1449 = vmul.f32 %v1415, %v1431
      %v1450 = vmul.f32 %v1416, %v1431
      %v1451 = vmul.f32 %v1417, %v1431
      %v1452 = vmul.f32 %v1418, %v1431
      %v1453 = vmul.f32 %v1419, %v1431
      %v1454 = vmul.f32 %v1420, %v1431
      %v1455 = vmul.f32 %v1421, %v1431
      %v1456 = vmul.f32 %v1422, %v1431
      %v1457 = vmul.f32 %v1423, %v1431
      %v1458 = vmul.f32 %v1424, %v1431
      %v1459 = vmul.f32 %v1425, %v1431
      %v1460 = vmul.f32 %v1426, %v1431
      %v1461 = vmul.f32 %v1427, %v1431
      %v1462 = vmul.f32 %v1428, %v1431
      %v1463 = vmul.f32 %v1429, %v1431
      %vm1464 = vcmp.lt.s32.totalorder %v1043, 2
      %vm1465 = vcmp.lt.s32.totalorder %v1043, 4
      %v1466 = vsel %vm1465, %v1432, %v1270
      %v1467 = vsel %vm1465, %v1433, %v1271
      %v1468 = vsel %vm1465, %v1434, %v1272
      %v1469 = vsel %vm1465, %v1435, %v1273
      %v1470 = vsel %vm1465, %v1436, %v1274
      %v1471 = vsel %vm1465, %v1437, %v1275
      %v1472 = vsel %vm1465, %v1438, %v1276
      %v1473 = vsel %vm1465, %v1439, %v1277
      %v1474 = vsel %vm1465, %v1440, %v1278
      %v1475 = vsel %vm1465, %v1441, %v1279
      %v1476 = vsel %vm1465, %v1442, %v1280
      %v1477 = vsel %vm1465, %v1443, %v1281
      %v1478 = vsel %vm1465, %v1444, %v1282
      %v1479 = vsel %vm1465, %v1445, %v1283
      %v1480 = vsel %vm1465, %v1446, %v1284
      %v1481 = vsel %vm1465, %v1447, %v1285
      %v1482 = vsel %vm1465, %v1448, %v1286
      %v1483 = vsel %vm1465, %v1449, %v1287
      %v1484 = vsel %vm1465, %v1450, %v1288
      %v1485 = vsel %vm1465, %v1451, %v1289
      %v1486 = vsel %vm1465, %v1452, %v1290
      %v1487 = vsel %vm1465, %v1453, %v1291
      %v1488 = vsel %vm1465, %v1454, %v1292
      %v1489 = vsel %vm1465, %v1455, %v1293
      %v1490 = vsel %vm1465, %v1456, %v1294
      %v1491 = vsel %vm1465, %v1457, %v1295
      %v1492 = vsel %vm1465, %v1458, %v1296
      %v1493 = vsel %vm1465, %v1459, %v1297
      %v1494 = vsel %vm1465, %v1460, %v1298
      %v1495 = vsel %vm1465, %v1461, %v1299
      %v1496 = vsel %vm1465, %v1462, %v1300
      %v1497 = vsel %vm1465, %v1463, %v1301
      %v1498 = vsel %vm1464, %v1334, %v1466
      %v1499 = vsel %vm1464, %v1335, %v1467
      %v1500 = vsel %vm1464, %v1336, %v1468
      %v1501 = vsel %vm1464, %v1337, %v1469
      %v1502 = vsel %vm1464, %v1338, %v1470
      %v1503 = vsel %vm1464, %v1339, %v1471
      %v1504 = vsel %vm1464, %v1340, %v1472
      %v1505 = vsel %vm1464, %v1341, %v1473
      %v1506 = vsel %vm1464, %v1342, %v1474
      %v1507 = vsel %vm1464, %v1343, %v1475
      %v1508 = vsel %vm1464, %v1344, %v1476
      %v1509 = vsel %vm1464, %v1345, %v1477
      %v1510 = vsel %vm1464, %v1346, %v1478
      %v1511 = vsel %vm1464, %v1347, %v1479
      %v1512 = vsel %vm1464, %v1348, %v1480
      %v1513 = vsel %vm1464, %v1349, %v1481
      %v1514 = vsel %vm1464, %v1350, %v1482
      %v1515 = vsel %vm1464, %v1351, %v1483
      %v1516 = vsel %vm1464, %v1352, %v1484
      %v1517 = vsel %vm1464, %v1353, %v1485
      %v1518 = vsel %vm1464, %v1354, %v1486
      %v1519 = vsel %vm1464, %v1355, %v1487
      %v1520 = vsel %vm1464, %v1356, %v1488
      %v1521 = vsel %vm1464, %v1357, %v1489
      %v1522 = vsel %vm1464, %v1358, %v1490
      %v1523 = vsel %vm1464, %v1359, %v1491
      %v1524 = vsel %vm1464, %v1360, %v1492
      %v1525 = vsel %vm1464, %v1361, %v1493
      %v1526 = vsel %vm1464, %v1362, %v1494
      %v1527 = vsel %vm1464, %v1363, %v1495
      %v1528 = vsel %vm1464, %v1364, %v1496
      %v1529 = vsel %vm1464, %v1365, %v1497
      %1530 = vst.msk [vmem:[%s259] sm:$0xff] %vm1141, %v1498
      %1531 = vst.msk [vmem:[%s259 + $0x8] sm:$0xff] %vm1141, %v1499
      %1532 = vst.msk [vmem:[%s259 + $0x10] sm:$0xff] %vm1141, %v1500
      %1533 = vst.msk [vmem:[%s259 + $0x18] sm:$0xff] %vm1141, %v1501
      %1534 = vst.msk [vmem:[%s259 + $0x20] sm:$0xff] %vm1141, %v1502
      %1535 = vst.msk [vmem:[%s259 + $0x28] sm:$0xff] %vm1141, %v1503
      %1536 = vst.msk [vmem:[%s259 + $0x30] sm:$0xff] %vm1141, %v1504
      %1537 = vst.msk [vmem:[%s259 + $0x38] sm:$0xff] %vm1141, %v1505
      %1538 = vst.msk [vmem:[%s259 + $0x40] sm:$0xff] %vm1141, %v1506
      %1539 = vst.msk [vmem:[%s259 + $0x48] sm:$0xff] %vm1141, %v1507
      %1540 = vst.msk [vmem:[%s259 + $0x50] sm:$0xff] %vm1141, %v1508
      %1541 = vst.msk [vmem:[%s259 + $0x58] sm:$0xff] %vm1141, %v1509
      %1542 = vst.msk [vmem:[%s259 + $0x60] sm:$0xff] %vm1141, %v1510
      %1543 = vst.msk [vmem:[%s259 + $0x68] sm:$0xff] %vm1141, %v1511
      %1544 = vst.msk [vmem:[%s259 + $0x70] sm:$0xff] %vm1141, %v1512
      %1545 = vst.msk [vmem:[%s259 + $0x78] sm:$0xff] %vm1141, %v1513
      %1546 = vst.msk [vmem:[%s259 + $0x80] sm:$0xff] %vm1141, %v1514
      %1547 = vst.msk [vmem:[%s259 + $0x88] sm:$0xff] %vm1141, %v1515
      %1548 = vst.msk [vmem:[%s259 + $0x90] sm:$0xff] %vm1141, %v1516
      %1549 = vst.msk [vmem:[%s259 + $0x98] sm:$0xff] %vm1141, %v1517
      %1550 = vst.msk [vmem:[%s259 + $0xa0] sm:$0xff] %vm1141, %v1518
      %1551 = vst.msk [vmem:[%s259 + $0xa8] sm:$0xff] %vm1141, %v1519
      %1552 = vst.msk [vmem:[%s259 + $0xb0] sm:$0xff] %vm1141, %v1520
      %1553 = vst.msk [vmem:[%s259 + $0xb8] sm:$0xff] %vm1141, %v1521
      %1554 = vst.msk [vmem:[%s259 + $0xc0] sm:$0xff] %vm1141, %v1522
      %1555 = vst.msk [vmem:[%s259 + $0xc8] sm:$0xff] %vm1141, %v1523
      %1556 = vst.msk [vmem:[%s259 + $0xd0] sm:$0xff] %vm1141, %v1524
      %1557 = vst.msk [vmem:[%s259 + $0xd8] sm:$0xff] %vm1141, %v1525
      %1558 = vst.msk [vmem:[%s259 + $0xe0] sm:$0xff] %vm1141, %v1526
      %1559 = vst.msk [vmem:[%s259 + $0xe8] sm:$0xff] %vm1141, %v1527
      %1560 = vst.msk [vmem:[%s259 + $0xf0] sm:$0xff] %vm1141, %v1528
      %1561 = vst.msk [vmem:[%s259 + $0xf8] sm:$0xff] %vm1141, %v1529
      %s1562 = scalar_lea.vmem %s249, 256
      %1563 = vst.msk [vmem:[%s1562] sm:$0xff] %vm1141, %v497
      %1564 = vst.msk [vmem:[%s1562 + $0x8] sm:$0xff] %vm1141, %v501
      %1565 = vst.msk [vmem:[%s1562 + $0x10] sm:$0xff] %vm1141, %v507
      %1566 = vst.msk [vmem:[%s1562 + $0x18] sm:$0xff] %vm1141, %v511
      %1567 = vst.msk [vmem:[%s1562 + $0x20] sm:$0xff] %vm1141, %v517
      %1568 = vst.msk [vmem:[%s1562 + $0x28] sm:$0xff] %vm1141, %v521
      %1569 = vst.msk [vmem:[%s1562 + $0x30] sm:$0xff] %vm1141, %v527
      %1570 = vst.msk [vmem:[%s1562 + $0x38] sm:$0xff] %vm1141, %v531
      %1571 = vst.msk [vmem:[%s1562 + $0x40] sm:$0xff] %vm1141, %v537
      %1572 = vst.msk [vmem:[%s1562 + $0x48] sm:$0xff] %vm1141, %v541
      %1573 = vst.msk [vmem:[%s1562 + $0x50] sm:$0xff] %vm1141, %v547
      %1574 = vst.msk [vmem:[%s1562 + $0x58] sm:$0xff] %vm1141, %v551
      %1575 = vst.msk [vmem:[%s1562 + $0x60] sm:$0xff] %vm1141, %v557
      %1576 = vst.msk [vmem:[%s1562 + $0x68] sm:$0xff] %vm1141, %v561
      %1577 = vst.msk [vmem:[%s1562 + $0x70] sm:$0xff] %vm1141, %v567
      %1578 = vst.msk [vmem:[%s1562 + $0x78] sm:$0xff] %vm1141, %v571
      %1579 = vst.msk [vmem:[%s1562 + $0x80] sm:$0xff] %vm1141, %v577
      %1580 = vst.msk [vmem:[%s1562 + $0x88] sm:$0xff] %vm1141, %v581
      %1581 = vst.msk [vmem:[%s1562 + $0x90] sm:$0xff] %vm1141, %v587
      %1582 = vst.msk [vmem:[%s1562 + $0x98] sm:$0xff] %vm1141, %v591
      %1583 = vst.msk [vmem:[%s1562 + $0xa0] sm:$0xff] %vm1141, %v597
      %1584 = vst.msk [vmem:[%s1562 + $0xa8] sm:$0xff] %vm1141, %v601
      %1585 = vst.msk [vmem:[%s1562 + $0xb0] sm:$0xff] %vm1141, %v607
      %1586 = vst.msk [vmem:[%s1562 + $0xb8] sm:$0xff] %vm1141, %v611
      %1587 = vst.msk [vmem:[%s1562 + $0xc0] sm:$0xff] %vm1141, %v617
      %1588 = vst.msk [vmem:[%s1562 + $0xc8] sm:$0xff] %vm1141, %v621
      %1589 = vst.msk [vmem:[%s1562 + $0xd0] sm:$0xff] %vm1141, %v627
      %1590 = vst.msk [vmem:[%s1562 + $0xd8] sm:$0xff] %vm1141, %v631
      %1591 = vst.msk [vmem:[%s1562 + $0xe0] sm:$0xff] %vm1141, %v637
      %1592 = vst.msk [vmem:[%s1562 + $0xe8] sm:$0xff] %vm1141, %v641
      %1593 = vst.msk [vmem:[%s1562 + $0xf0] sm:$0xff] %vm1141, %v647
      %1594 = vst.msk [vmem:[%s1562 + $0xf8] sm:$0xff] %vm1141, %v651
      %v1595 = vmul.f32 %v497, 0.5
      %v1596 = vmul.f32 %v501, 0.5
      %v1597 = vmul.f32 %v507, 0.5
      %v1598 = vmul.f32 %v511, 0.5
      %v1599 = vmul.f32 %v517, 0.5
      %v1600 = vmul.f32 %v521, 0.5
      %v1601 = vmul.f32 %v527, 0.5
      %v1602 = vmul.f32 %v531, 0.5
      %v1603 = vmul.f32 %v537, 0.5
      %v1604 = vmul.f32 %v541, 0.5
      %v1605 = vmul.f32 %v547, 0.5
      %v1606 = vmul.f32 %v551, 0.5
      %v1607 = vmul.f32 %v557, 0.5
      %v1608 = vmul.f32 %v561, 0.5
      %v1609 = vmul.f32 %v567, 0.5
      %v1610 = vmul.f32 %v571, 0.5
      %v1611 = vmul.f32 %v577, 0.5
      %v1612 = vmul.f32 %v581, 0.5
      %v1613 = vmul.f32 %v587, 0.5
      %v1614 = vmul.f32 %v591, 0.5
      %v1615 = vmul.f32 %v597, 0.5
      %v1616 = vmul.f32 %v601, 0.5
      %v1617 = vmul.f32 %v607, 0.5
      %v1618 = vmul.f32 %v611, 0.5
      %v1619 = vmul.f32 %v617, 0.5
      %v1620 = vmul.f32 %v621, 0.5
      %v1621 = vmul.f32 %v627, 0.5
      %v1622 = vmul.f32 %v631, 0.5
      %v1623 = vmul.f32 %v637, 0.5
      %v1624 = vmul.f32 %v641, 0.5
      %v1625 = vmul.f32 %v647, 0.5
      %v1626 = vmul.f32 %v651, 0.5
      %v1627 = vtanh.pop %v1595
      %v1628 = vtanh.pop %v1596
      %v1629 = vtanh.pop %v1597
      %v1630 = vtanh.pop %v1598
      %v1631 = vtanh.pop %v1599
      %v1632 = vtanh.pop %v1600
      %v1633 = vtanh.pop %v1601
      %v1634 = vtanh.pop %v1602
      %v1635 = vtanh.pop %v1603
      %v1636 = vtanh.pop %v1604
      %v1637 = vtanh.pop %v1605
      %v1638 = vtanh.pop %v1606
      %v1639 = vtanh.pop %v1607
      %v1640 = vtanh.pop %v1608
      %v1641 = vtanh.pop %v1609
      %v1642 = vtanh.pop %v1610
      %v1643 = vtanh.pop %v1611
      %v1644 = vtanh.pop %v1612
      %v1645 = vtanh.pop %v1613
      %v1646 = vtanh.pop %v1614
      %v1647 = vtanh.pop %v1615
      %v1648 = vtanh.pop %v1616
      %v1649 = vtanh.pop %v1617
      %v1650 = vtanh.pop %v1618
      %v1651 = vtanh.pop %v1619
      %v1652 = vtanh.pop %v1620
      %v1653 = vtanh.pop %v1621
      %v1654 = vtanh.pop %v1622
      %v1655 = vtanh.pop %v1623
      %v1656 = vtanh.pop %v1624
      %v1657 = vtanh.pop %v1625
      %v1658 = vtanh.pop %v1626
      %v1659 = vmul.f32 %v1627, 0.5
      %v1660 = vmul.f32 %v1628, 0.5
      %v1661 = vmul.f32 %v1629, 0.5
      %v1662 = vmul.f32 %v1630, 0.5
      %v1663 = vmul.f32 %v1631, 0.5
      %v1664 = vmul.f32 %v1632, 0.5
      %v1665 = vmul.f32 %v1633, 0.5
      %v1666 = vmul.f32 %v1634, 0.5
      %v1667 = vmul.f32 %v1635, 0.5
      %v1668 = vmul.f32 %v1636, 0.5
      %v1669 = vmul.f32 %v1637, 0.5
      %v1670 = vmul.f32 %v1638, 0.5
      %v1671 = vmul.f32 %v1639, 0.5
      %v1672 = vmul.f32 %v1640, 0.5
      %v1673 = vmul.f32 %v1641, 0.5
      %v1674 = vmul.f32 %v1642, 0.5
      %v1675 = vmul.f32 %v1643, 0.5
      %v1676 = vmul.f32 %v1644, 0.5
      %v1677 = vmul.f32 %v1645, 0.5
      %v1678 = vmul.f32 %v1646, 0.5
      %v1679 = vmul.f32 %v1647, 0.5
      %v1680 = vmul.f32 %v1648, 0.5
      %v1681 = vmul.f32 %v1649, 0.5
      %v1682 = vmul.f32 %v1650, 0.5
      %v1683 = vmul.f32 %v1651, 0.5
      %v1684 = vmul.f32 %v1652, 0.5
      %v1685 = vmul.f32 %v1653, 0.5
      %v1686 = vmul.f32 %v1654, 0.5
      %v1687 = vmul.f32 %v1655, 0.5
      %v1688 = vmul.f32 %v1656, 0.5
      %v1689 = vmul.f32 %v1657, 0.5
      %v1690 = vmul.f32 %v1658, 0.5
      %v1691 = vadd.f32 %v1659, 0.5
      %v1692 = vadd.f32 %v1660, 0.5
      %v1693 = vadd.f32 %v1661, 0.5
      %v1694 = vadd.f32 %v1662, 0.5
      %v1695 = vadd.f32 %v1663, 0.5
      %v1696 = vadd.f32 %v1664, 0.5
      %v1697 = vadd.f32 %v1665, 0.5
      %v1698 = vadd.f32 %v1666, 0.5
      %v1699 = vadd.f32 %v1667, 0.5
      %v1700 = vadd.f32 %v1668, 0.5
      %v1701 = vadd.f32 %v1669, 0.5
      %v1702 = vadd.f32 %v1670, 0.5
      %v1703 = vadd.f32 %v1671, 0.5
      %v1704 = vadd.f32 %v1672, 0.5
      %v1705 = vadd.f32 %v1673, 0.5
      %v1706 = vadd.f32 %v1674, 0.5
      %v1707 = vadd.f32 %v1675, 0.5
      %v1708 = vadd.f32 %v1676, 0.5
      %v1709 = vadd.f32 %v1677, 0.5
      %v1710 = vadd.f32 %v1678, 0.5
      %v1711 = vadd.f32 %v1679, 0.5
      %v1712 = vadd.f32 %v1680, 0.5
      %v1713 = vadd.f32 %v1681, 0.5
      %v1714 = vadd.f32 %v1682, 0.5
      %v1715 = vadd.f32 %v1683, 0.5
      %v1716 = vadd.f32 %v1684, 0.5
      %v1717 = vadd.f32 %v1685, 0.5
      %v1718 = vadd.f32 %v1686, 0.5
      %v1719 = vadd.f32 %v1687, 0.5
      %v1720 = vadd.f32 %v1688, 0.5
      %v1721 = vadd.f32 %v1689, 0.5
      %v1722 = vadd.f32 %v1690, 0.5
      %v1723 = vmul.f32 %v1691, 16.0
      %v1724 = vmul.f32 %v1692, 16.0
      %v1725 = vmul.f32 %v1693, 16.0
      %v1726 = vmul.f32 %v1694, 16.0
      %v1727 = vmul.f32 %v1695, 16.0
      %v1728 = vmul.f32 %v1696, 16.0
      %v1729 = vmul.f32 %v1697, 16.0
      %v1730 = vmul.f32 %v1698, 16.0
      %v1731 = vmul.f32 %v1699, 16.0
      %v1732 = vmul.f32 %v1700, 16.0
      %v1733 = vmul.f32 %v1701, 16.0
      %v1734 = vmul.f32 %v1702, 16.0
      %v1735 = vmul.f32 %v1703, 16.0
      %v1736 = vmul.f32 %v1704, 16.0
      %v1737 = vmul.f32 %v1705, 16.0
      %v1738 = vmul.f32 %v1706, 16.0
      %v1739 = vmul.f32 %v1707, 16.0
      %v1740 = vmul.f32 %v1708, 16.0
      %v1741 = vmul.f32 %v1709, 16.0
      %v1742 = vmul.f32 %v1710, 16.0
      %v1743 = vmul.f32 %v1711, 16.0
      %v1744 = vmul.f32 %v1712, 16.0
      %v1745 = vmul.f32 %v1713, 16.0
      %v1746 = vmul.f32 %v1714, 16.0
      %v1747 = vmul.f32 %v1715, 16.0
      %v1748 = vmul.f32 %v1716, 16.0
      %v1749 = vmul.f32 %v1717, 16.0
      %v1750 = vmul.f32 %v1718, 16.0
      %v1751 = vmul.f32 %v1719, 16.0
      %v1752 = vmul.f32 %v1720, 16.0
      %v1753 = vmul.f32 %v1721, 16.0
      %v1754 = vmul.f32 %v1722, 16.0
      %v1755 = vadd.f32 %v1723, %v1109
      %v1756 = vadd.f32 %v1724, %v1110
      %v1757 = vadd.f32 %v1725, %v1111
      %v1758 = vadd.f32 %v1726, %v1112
      %v1759 = vadd.f32 %v1727, %v1113
      %v1760 = vadd.f32 %v1728, %v1114
      %v1761 = vadd.f32 %v1729, %v1115
      %v1762 = vadd.f32 %v1730, %v1116
      %v1763 = vadd.f32 %v1731, %v1117
      %v1764 = vadd.f32 %v1732, %v1118
      %v1765 = vadd.f32 %v1733, %v1119
      %v1766 = vadd.f32 %v1734, %v1120
      %v1767 = vadd.f32 %v1735, %v1121
      %v1768 = vadd.f32 %v1736, %v1122
      %v1769 = vadd.f32 %v1737, %v1123
      %v1770 = vadd.f32 %v1738, %v1124
      %v1771 = vadd.f32 %v1739, %v1125
      %v1772 = vadd.f32 %v1740, %v1126
      %v1773 = vadd.f32 %v1741, %v1127
      %v1774 = vadd.f32 %v1742, %v1128
      %v1775 = vadd.f32 %v1743, %v1129
      %v1776 = vadd.f32 %v1744, %v1130
      %v1777 = vadd.f32 %v1745, %v1131
      %v1778 = vadd.f32 %v1746, %v1132
      %v1779 = vadd.f32 %v1747, %v1133
      %v1780 = vadd.f32 %v1748, %v1134
      %v1781 = vadd.f32 %v1749, %v1135
      %v1782 = vadd.f32 %v1750, %v1136
      %v1783 = vadd.f32 %v1751, %v1137
      %v1784 = vadd.f32 %v1752, %v1138
      %v1785 = vadd.f32 %v1753, %v1139
      %v1786 = vadd.f32 %v1754, %v1140
      %v1787 = vmul.f32 %v1691, 2.0
      %v1788 = vmul.f32 %v1692, 2.0
      %v1789 = vmul.f32 %v1693, 2.0
      %v1790 = vmul.f32 %v1694, 2.0
      %v1791 = vmul.f32 %v1695, 2.0
      %v1792 = vmul.f32 %v1696, 2.0
      %v1793 = vmul.f32 %v1697, 2.0
      %v1794 = vmul.f32 %v1698, 2.0
      %v1795 = vmul.f32 %v1699, 2.0
      %v1796 = vmul.f32 %v1700, 2.0
      %v1797 = vmul.f32 %v1701, 2.0
      %v1798 = vmul.f32 %v1702, 2.0
      %v1799 = vmul.f32 %v1703, 2.0
      %v1800 = vmul.f32 %v1704, 2.0
      %v1801 = vmul.f32 %v1705, 2.0
      %v1802 = vmul.f32 %v1706, 2.0
      %v1803 = vmul.f32 %v1707, 2.0
      %v1804 = vmul.f32 %v1708, 2.0
      %v1805 = vmul.f32 %v1709, 2.0
      %v1806 = vmul.f32 %v1710, 2.0
      %v1807 = vmul.f32 %v1711, 2.0
      %v1808 = vmul.f32 %v1712, 2.0
      %v1809 = vmul.f32 %v1713, 2.0
      %v1810 = vmul.f32 %v1714, 2.0
      %v1811 = vmul.f32 %v1715, 2.0
      %v1812 = vmul.f32 %v1716, 2.0
      %v1813 = vmul.f32 %v1717, 2.0
      %v1814 = vmul.f32 %v1718, 2.0
      %v1815 = vmul.f32 %v1719, 2.0
      %v1816 = vmul.f32 %v1720, 2.0
      %v1817 = vmul.f32 %v1721, 2.0
      %v1818 = vmul.f32 %v1722, 2.0
      %v1819 = vmul.f32 %v1787, %v1787
      %v1820 = vmul.f32 %v1788, %v1788
      %v1821 = vmul.f32 %v1789, %v1789
      %v1822 = vmul.f32 %v1790, %v1790
      %v1823 = vmul.f32 %v1791, %v1791
      %v1824 = vmul.f32 %v1792, %v1792
      %v1825 = vmul.f32 %v1793, %v1793
      %v1826 = vmul.f32 %v1794, %v1794
      %v1827 = vmul.f32 %v1795, %v1795
      %v1828 = vmul.f32 %v1796, %v1796
      %v1829 = vmul.f32 %v1797, %v1797
      %v1830 = vmul.f32 %v1798, %v1798
      %v1831 = vmul.f32 %v1799, %v1799
      %v1832 = vmul.f32 %v1800, %v1800
      %v1833 = vmul.f32 %v1801, %v1801
      %v1834 = vmul.f32 %v1802, %v1802
      %v1835 = vmul.f32 %v1803, %v1803
      %v1836 = vmul.f32 %v1804, %v1804
      %v1837 = vmul.f32 %v1805, %v1805
      %v1838 = vmul.f32 %v1806, %v1806
      %v1839 = vmul.f32 %v1807, %v1807
      %v1840 = vmul.f32 %v1808, %v1808
      %v1841 = vmul.f32 %v1809, %v1809
      %v1842 = vmul.f32 %v1810, %v1810
      %v1843 = vmul.f32 %v1811, %v1811
      %v1844 = vmul.f32 %v1812, %v1812
      %v1845 = vmul.f32 %v1813, %v1813
      %v1846 = vmul.f32 %v1814, %v1814
      %v1847 = vmul.f32 %v1815, %v1815
      %v1848 = vmul.f32 %v1816, %v1816
      %v1849 = vmul.f32 %v1817, %v1817
      %v1850 = vmul.f32 %v1818, %v1818
      %v1851 = vsel %vm1430, 16.0, 30.0
      %v1852 = vmul.f32 %v1819, %v1851
      %v1853 = vmul.f32 %v1820, %v1851
      %v1854 = vmul.f32 %v1821, %v1851
      %v1855 = vmul.f32 %v1822, %v1851
      %v1856 = vmul.f32 %v1823, %v1851
      %v1857 = vmul.f32 %v1824, %v1851
      %v1858 = vmul.f32 %v1825, %v1851
      %v1859 = vmul.f32 %v1826, %v1851
      %v1860 = vmul.f32 %v1827, %v1851
      %v1861 = vmul.f32 %v1828, %v1851
      %v1862 = vmul.f32 %v1829, %v1851
      %v1863 = vmul.f32 %v1830, %v1851
      %v1864 = vmul.f32 %v1831, %v1851
      %v1865 = vmul.f32 %v1832, %v1851
      %v1866 = vmul.f32 %v1833, %v1851
      %v1867 = vmul.f32 %v1834, %v1851
      %v1868 = vmul.f32 %v1835, %v1851
      %v1869 = vmul.f32 %v1836, %v1851
      %v1870 = vmul.f32 %v1837, %v1851
      %v1871 = vmul.f32 %v1838, %v1851
      %v1872 = vmul.f32 %v1839, %v1851
      %v1873 = vmul.f32 %v1840, %v1851
      %v1874 = vmul.f32 %v1841, %v1851
      %v1875 = vmul.f32 %v1842, %v1851
      %v1876 = vmul.f32 %v1843, %v1851
      %v1877 = vmul.f32 %v1844, %v1851
      %v1878 = vmul.f32 %v1845, %v1851
      %v1879 = vmul.f32 %v1846, %v1851
      %v1880 = vmul.f32 %v1847, %v1851
      %v1881 = vmul.f32 %v1848, %v1851
      %v1882 = vmul.f32 %v1849, %v1851
      %v1883 = vmul.f32 %v1850, %v1851
      %v1884 = vsel %vm1465, %v1852, %v1691
      %v1885 = vsel %vm1465, %v1853, %v1692
      %v1886 = vsel %vm1465, %v1854, %v1693
      %v1887 = vsel %vm1465, %v1855, %v1694
      %v1888 = vsel %vm1465, %v1856, %v1695
      %v1889 = vsel %vm1465, %v1857, %v1696
      %v1890 = vsel %vm1465, %v1858, %v1697
      %v1891 = vsel %vm1465, %v1859, %v1698
      %v1892 = vsel %vm1465, %v1860, %v1699
      %v1893 = vsel %vm1465, %v1861, %v1700
      %v1894 = vsel %vm1465, %v1862, %v1701
      %v1895 = vsel %vm1465, %v1863, %v1702
      %v1896 = vsel %vm1465, %v1864, %v1703
      %v1897 = vsel %vm1465, %v1865, %v1704
      %v1898 = vsel %vm1465, %v1866, %v1705
      %v1899 = vsel %vm1465, %v1867, %v1706
      %v1900 = vsel %vm1465, %v1868, %v1707
      %v1901 = vsel %vm1465, %v1869, %v1708
      %v1902 = vsel %vm1465, %v1870, %v1709
      %v1903 = vsel %vm1465, %v1871, %v1710
      %v1904 = vsel %vm1465, %v1872, %v1711
      %v1905 = vsel %vm1465, %v1873, %v1712
      %v1906 = vsel %vm1465, %v1874, %v1713
      %v1907 = vsel %vm1465, %v1875, %v1714
      %v1908 = vsel %vm1465, %v1876, %v1715
      %v1909 = vsel %vm1465, %v1877, %v1716
      %v1910 = vsel %vm1465, %v1878, %v1717
      %v1911 = vsel %vm1465, %v1879, %v1718
      %v1912 = vsel %vm1465, %v1880, %v1719
      %v1913 = vsel %vm1465, %v1881, %v1720
      %v1914 = vsel %vm1465, %v1882, %v1721
      %v1915 = vsel %vm1465, %v1883, %v1722
      %v1916 = vsel %vm1464, %v1755, %v1884
      %v1917 = vsel %vm1464, %v1756, %v1885
      %v1918 = vsel %vm1464, %v1757, %v1886
      %v1919 = vsel %vm1464, %v1758, %v1887
      %v1920 = vsel %vm1464, %v1759, %v1888
      %v1921 = vsel %vm1464, %v1760, %v1889
      %v1922 = vsel %vm1464, %v1761, %v1890
      %v1923 = vsel %vm1464, %v1762, %v1891
      %v1924 = vsel %vm1464, %v1763, %v1892
      %v1925 = vsel %vm1464, %v1764, %v1893
      %v1926 = vsel %vm1464, %v1765, %v1894
      %v1927 = vsel %vm1464, %v1766, %v1895
      %v1928 = vsel %vm1464, %v1767, %v1896
      %v1929 = vsel %vm1464, %v1768, %v1897
      %v1930 = vsel %vm1464, %v1769, %v1898
      %v1931 = vsel %vm1464, %v1770, %v1899
      %v1932 = vsel %vm1464, %v1771, %v1900
      %v1933 = vsel %vm1464, %v1772, %v1901
      %v1934 = vsel %vm1464, %v1773, %v1902
      %v1935 = vsel %vm1464, %v1774, %v1903
      %v1936 = vsel %vm1464, %v1775, %v1904
      %v1937 = vsel %vm1464, %v1776, %v1905
      %v1938 = vsel %vm1464, %v1777, %v1906
      %v1939 = vsel %vm1464, %v1778, %v1907
      %v1940 = vsel %vm1464, %v1779, %v1908
      %v1941 = vsel %vm1464, %v1780, %v1909
      %v1942 = vsel %vm1464, %v1781, %v1910
      %v1943 = vsel %vm1464, %v1782, %v1911
      %v1944 = vsel %vm1464, %v1783, %v1912
      %v1945 = vsel %vm1464, %v1784, %v1913
      %v1946 = vsel %vm1464, %v1785, %v1914
      %v1947 = vsel %vm1464, %v1786, %v1915
      %s1948 = scalar_lea.vmem %s259, 256
      %1949 = vst.msk [vmem:[%s1948] sm:$0xff] %vm1141, %v1916
      %1950 = vst.msk [vmem:[%s1948 + $0x8] sm:$0xff] %vm1141, %v1917
      %1951 = vst.msk [vmem:[%s1948 + $0x10] sm:$0xff] %vm1141, %v1918
      %1952 = vst.msk [vmem:[%s1948 + $0x18] sm:$0xff] %vm1141, %v1919
      %1953 = vst.msk [vmem:[%s1948 + $0x20] sm:$0xff] %vm1141, %v1920
      %1954 = vst.msk [vmem:[%s1948 + $0x28] sm:$0xff] %vm1141, %v1921
      %1955 = vst.msk [vmem:[%s1948 + $0x30] sm:$0xff] %vm1141, %v1922
      %1956 = vst.msk [vmem:[%s1948 + $0x38] sm:$0xff] %vm1141, %v1923
      %1957 = vst.msk [vmem:[%s1948 + $0x40] sm:$0xff] %vm1141, %v1924
      %1958 = vst.msk [vmem:[%s1948 + $0x48] sm:$0xff] %vm1141, %v1925
      %1959 = vst.msk [vmem:[%s1948 + $0x50] sm:$0xff] %vm1141, %v1926
      %1960 = vst.msk [vmem:[%s1948 + $0x58] sm:$0xff] %vm1141, %v1927
      %1961 = vst.msk [vmem:[%s1948 + $0x60] sm:$0xff] %vm1141, %v1928
      %1962 = vst.msk [vmem:[%s1948 + $0x68] sm:$0xff] %vm1141, %v1929
      %1963 = vst.msk [vmem:[%s1948 + $0x70] sm:$0xff] %vm1141, %v1930
      %1964 = vst.msk [vmem:[%s1948 + $0x78] sm:$0xff] %vm1141, %v1931
      %1965 = vst.msk [vmem:[%s1948 + $0x80] sm:$0xff] %vm1141, %v1932
      %1966 = vst.msk [vmem:[%s1948 + $0x88] sm:$0xff] %vm1141, %v1933
      %1967 = vst.msk [vmem:[%s1948 + $0x90] sm:$0xff] %vm1141, %v1934
      %1968 = vst.msk [vmem:[%s1948 + $0x98] sm:$0xff] %vm1141, %v1935
      %1969 = vst.msk [vmem:[%s1948 + $0xa0] sm:$0xff] %vm1141, %v1936
      %1970 = vst.msk [vmem:[%s1948 + $0xa8] sm:$0xff] %vm1141, %v1937
      %1971 = vst.msk [vmem:[%s1948 + $0xb0] sm:$0xff] %vm1141, %v1938
      %1972 = vst.msk [vmem:[%s1948 + $0xb8] sm:$0xff] %vm1141, %v1939
      %1973 = vst.msk [vmem:[%s1948 + $0xc0] sm:$0xff] %vm1141, %v1940
      %1974 = vst.msk [vmem:[%s1948 + $0xc8] sm:$0xff] %vm1141, %v1941
      %1975 = vst.msk [vmem:[%s1948 + $0xd0] sm:$0xff] %vm1141, %v1942
      %1976 = vst.msk [vmem:[%s1948 + $0xd8] sm:$0xff] %vm1141, %v1943
      %1977 = vst.msk [vmem:[%s1948 + $0xe0] sm:$0xff] %vm1141, %v1944
      %1978 = vst.msk [vmem:[%s1948 + $0xe8] sm:$0xff] %vm1141, %v1945
      %1979 = vst.msk [vmem:[%s1948 + $0xf0] sm:$0xff] %vm1141, %v1946
      %1980 = vst.msk [vmem:[%s1948 + $0xf8] sm:$0xff] %vm1141, %v1947
      %s1981 = scalar_lea.vmem %s249, 512
      %1982 = vst.msk [vmem:[%s1981] sm:$0xff] %vm1141, %v688
      %1983 = vst.msk [vmem:[%s1981 + $0x8] sm:$0xff] %vm1141, %v691
      %1984 = vst.msk [vmem:[%s1981 + $0x10] sm:$0xff] %vm1141, %v696
      %1985 = vst.msk [vmem:[%s1981 + $0x18] sm:$0xff] %vm1141, %v699
      %1986 = vst.msk [vmem:[%s1981 + $0x20] sm:$0xff] %vm1141, %v704
      %1987 = vst.msk [vmem:[%s1981 + $0x28] sm:$0xff] %vm1141, %v707
      %1988 = vst.msk [vmem:[%s1981 + $0x30] sm:$0xff] %vm1141, %v712
      %1989 = vst.msk [vmem:[%s1981 + $0x38] sm:$0xff] %vm1141, %v715
      %1990 = vst.msk [vmem:[%s1981 + $0x40] sm:$0xff] %vm1141, %v720
      %1991 = vst.msk [vmem:[%s1981 + $0x48] sm:$0xff] %vm1141, %v723
      %1992 = vst.msk [vmem:[%s1981 + $0x50] sm:$0xff] %vm1141, %v728
      %1993 = vst.msk [vmem:[%s1981 + $0x58] sm:$0xff] %vm1141, %v731
      %1994 = vst.msk [vmem:[%s1981 + $0x60] sm:$0xff] %vm1141, %v736
      %1995 = vst.msk [vmem:[%s1981 + $0x68] sm:$0xff] %vm1141, %v739
      %1996 = vst.msk [vmem:[%s1981 + $0x70] sm:$0xff] %vm1141, %v744
      %1997 = vst.msk [vmem:[%s1981 + $0x78] sm:$0xff] %vm1141, %v747
      %1998 = vst.msk [vmem:[%s1981 + $0x80] sm:$0xff] %vm1141, %v752
      %1999 = vst.msk [vmem:[%s1981 + $0x88] sm:$0xff] %vm1141, %v755
      %2000 = vst.msk [vmem:[%s1981 + $0x90] sm:$0xff] %vm1141, %v760
      %2001 = vst.msk [vmem:[%s1981 + $0x98] sm:$0xff] %vm1141, %v763
      %2002 = vst.msk [vmem:[%s1981 + $0xa0] sm:$0xff] %vm1141, %v768
      %2003 = vst.msk [vmem:[%s1981 + $0xa8] sm:$0xff] %vm1141, %v771
      %2004 = vst.msk [vmem:[%s1981 + $0xb0] sm:$0xff] %vm1141, %v776
      %2005 = vst.msk [vmem:[%s1981 + $0xb8] sm:$0xff] %vm1141, %v779
      %2006 = vst.msk [vmem:[%s1981 + $0xc0] sm:$0xff] %vm1141, %v784
      %2007 = vst.msk [vmem:[%s1981 + $0xc8] sm:$0xff] %vm1141, %v787
      %2008 = vst.msk [vmem:[%s1981 + $0xd0] sm:$0xff] %vm1141, %v792
      %2009 = vst.msk [vmem:[%s1981 + $0xd8] sm:$0xff] %vm1141, %v795
      %2010 = vst.msk [vmem:[%s1981 + $0xe0] sm:$0xff] %vm1141, %v800
      %2011 = vst.msk [vmem:[%s1981 + $0xe8] sm:$0xff] %vm1141, %v803
      %2012 = vst.msk [vmem:[%s1981 + $0xf0] sm:$0xff] %vm1141, %v808
      %2013 = vst.msk [vmem:[%s1981 + $0xf8] sm:$0xff] %vm1141, %v811
      %v2014 = vmul.f32 %v688, 0.5
      %v2015 = vmul.f32 %v691, 0.5
      %v2016 = vmul.f32 %v696, 0.5
      %v2017 = vmul.f32 %v699, 0.5
      %v2018 = vmul.f32 %v704, 0.5
      %v2019 = vmul.f32 %v707, 0.5
      %v2020 = vmul.f32 %v712, 0.5
      %v2021 = vmul.f32 %v715, 0.5
      %v2022 = vmul.f32 %v720, 0.5
      %v2023 = vmul.f32 %v723, 0.5
      %v2024 = vmul.f32 %v728, 0.5
      %v2025 = vmul.f32 %v731, 0.5
      %v2026 = vmul.f32 %v736, 0.5
      %v2027 = vmul.f32 %v739, 0.5
      %v2028 = vmul.f32 %v744, 0.5
      %v2029 = vmul.f32 %v747, 0.5
      %v2030 = vmul.f32 %v752, 0.5
      %v2031 = vmul.f32 %v755, 0.5
      %v2032 = vmul.f32 %v760, 0.5
      %v2033 = vmul.f32 %v763, 0.5
      %v2034 = vmul.f32 %v768, 0.5
      %v2035 = vmul.f32 %v771, 0.5
      %v2036 = vmul.f32 %v776, 0.5
      %v2037 = vmul.f32 %v779, 0.5
      %v2038 = vmul.f32 %v784, 0.5
      %v2039 = vmul.f32 %v787, 0.5
      %v2040 = vmul.f32 %v792, 0.5
      %v2041 = vmul.f32 %v795, 0.5
      %v2042 = vmul.f32 %v800, 0.5
      %v2043 = vmul.f32 %v803, 0.5
      %v2044 = vmul.f32 %v808, 0.5
      %v2045 = vmul.f32 %v811, 0.5
      %v2046 = vtanh.pop %v2014
      %v2047 = vtanh.pop %v2015
      %v2048 = vtanh.pop %v2016
      %v2049 = vtanh.pop %v2017
      %v2050 = vtanh.pop %v2018
      %v2051 = vtanh.pop %v2019
      %v2052 = vtanh.pop %v2020
      %v2053 = vtanh.pop %v2021
      %v2054 = vtanh.pop %v2022
      %v2055 = vtanh.pop %v2023
      %v2056 = vtanh.pop %v2024
      %v2057 = vtanh.pop %v2025
      %v2058 = vtanh.pop %v2026
      %v2059 = vtanh.pop %v2027
      %v2060 = vtanh.pop %v2028
      %v2061 = vtanh.pop %v2029
      %v2062 = vtanh.pop %v2030
      %v2063 = vtanh.pop %v2031
      %v2064 = vtanh.pop %v2032
      %v2065 = vtanh.pop %v2033
      %v2066 = vtanh.pop %v2034
      %v2067 = vtanh.pop %v2035
      %v2068 = vtanh.pop %v2036
      %v2069 = vtanh.pop %v2037
      %v2070 = vtanh.pop %v2038
      %v2071 = vtanh.pop %v2039
      %v2072 = vtanh.pop %v2040
      %v2073 = vtanh.pop %v2041
      %v2074 = vtanh.pop %v2042
      %v2075 = vtanh.pop %v2043
      %v2076 = vtanh.pop %v2044
      %v2077 = vtanh.pop %v2045
      %v2078 = vmul.f32 %v2046, 0.5
      %v2079 = vmul.f32 %v2047, 0.5
      %v2080 = vmul.f32 %v2048, 0.5
      %v2081 = vmul.f32 %v2049, 0.5
      %v2082 = vmul.f32 %v2050, 0.5
      %v2083 = vmul.f32 %v2051, 0.5
      %v2084 = vmul.f32 %v2052, 0.5
      %v2085 = vmul.f32 %v2053, 0.5
      %v2086 = vmul.f32 %v2054, 0.5
      %v2087 = vmul.f32 %v2055, 0.5
      %v2088 = vmul.f32 %v2056, 0.5
      %v2089 = vmul.f32 %v2057, 0.5
      %v2090 = vmul.f32 %v2058, 0.5
      %v2091 = vmul.f32 %v2059, 0.5
      %v2092 = vmul.f32 %v2060, 0.5
      %v2093 = vmul.f32 %v2061, 0.5
      %v2094 = vmul.f32 %v2062, 0.5
      %v2095 = vmul.f32 %v2063, 0.5
      %v2096 = vmul.f32 %v2064, 0.5
      %v2097 = vmul.f32 %v2065, 0.5
      %v2098 = vmul.f32 %v2066, 0.5
      %v2099 = vmul.f32 %v2067, 0.5
      %v2100 = vmul.f32 %v2068, 0.5
      %v2101 = vmul.f32 %v2069, 0.5
      %v2102 = vmul.f32 %v2070, 0.5
      %v2103 = vmul.f32 %v2071, 0.5
      %v2104 = vmul.f32 %v2072, 0.5
      %v2105 = vmul.f32 %v2073, 0.5
      %v2106 = vmul.f32 %v2074, 0.5
      %v2107 = vmul.f32 %v2075, 0.5
      %v2108 = vmul.f32 %v2076, 0.5
      %v2109 = vmul.f32 %v2077, 0.5
      %v2110 = vadd.f32 %v2078, 0.5
      %v2111 = vadd.f32 %v2079, 0.5
      %v2112 = vadd.f32 %v2080, 0.5
      %v2113 = vadd.f32 %v2081, 0.5
      %v2114 = vadd.f32 %v2082, 0.5
      %v2115 = vadd.f32 %v2083, 0.5
      %v2116 = vadd.f32 %v2084, 0.5
      %v2117 = vadd.f32 %v2085, 0.5
      %v2118 = vadd.f32 %v2086, 0.5
      %v2119 = vadd.f32 %v2087, 0.5
      %v2120 = vadd.f32 %v2088, 0.5
      %v2121 = vadd.f32 %v2089, 0.5
      %v2122 = vadd.f32 %v2090, 0.5
      %v2123 = vadd.f32 %v2091, 0.5
      %v2124 = vadd.f32 %v2092, 0.5
      %v2125 = vadd.f32 %v2093, 0.5
      %v2126 = vadd.f32 %v2094, 0.5
      %v2127 = vadd.f32 %v2095, 0.5
      %v2128 = vadd.f32 %v2096, 0.5
      %v2129 = vadd.f32 %v2097, 0.5
      %v2130 = vadd.f32 %v2098, 0.5
      %v2131 = vadd.f32 %v2099, 0.5
      %v2132 = vadd.f32 %v2100, 0.5
      %v2133 = vadd.f32 %v2101, 0.5
      %v2134 = vadd.f32 %v2102, 0.5
      %v2135 = vadd.f32 %v2103, 0.5
      %v2136 = vadd.f32 %v2104, 0.5
      %v2137 = vadd.f32 %v2105, 0.5
      %v2138 = vadd.f32 %v2106, 0.5
      %v2139 = vadd.f32 %v2107, 0.5
      %v2140 = vadd.f32 %v2108, 0.5
      %v2141 = vadd.f32 %v2109, 0.5
      %v2142 = vmul.f32 %v2110, 16.0
      %v2143 = vmul.f32 %v2111, 16.0
      %v2144 = vmul.f32 %v2112, 16.0
      %v2145 = vmul.f32 %v2113, 16.0
      %v2146 = vmul.f32 %v2114, 16.0
      %v2147 = vmul.f32 %v2115, 16.0
      %v2148 = vmul.f32 %v2116, 16.0
      %v2149 = vmul.f32 %v2117, 16.0
      %v2150 = vmul.f32 %v2118, 16.0
      %v2151 = vmul.f32 %v2119, 16.0
      %v2152 = vmul.f32 %v2120, 16.0
      %v2153 = vmul.f32 %v2121, 16.0
      %v2154 = vmul.f32 %v2122, 16.0
      %v2155 = vmul.f32 %v2123, 16.0
      %v2156 = vmul.f32 %v2124, 16.0
      %v2157 = vmul.f32 %v2125, 16.0
      %v2158 = vmul.f32 %v2126, 16.0
      %v2159 = vmul.f32 %v2127, 16.0
      %v2160 = vmul.f32 %v2128, 16.0
      %v2161 = vmul.f32 %v2129, 16.0
      %v2162 = vmul.f32 %v2130, 16.0
      %v2163 = vmul.f32 %v2131, 16.0
      %v2164 = vmul.f32 %v2132, 16.0
      %v2165 = vmul.f32 %v2133, 16.0
      %v2166 = vmul.f32 %v2134, 16.0
      %v2167 = vmul.f32 %v2135, 16.0
      %v2168 = vmul.f32 %v2136, 16.0
      %v2169 = vmul.f32 %v2137, 16.0
      %v2170 = vmul.f32 %v2138, 16.0
      %v2171 = vmul.f32 %v2139, 16.0
      %v2172 = vmul.f32 %v2140, 16.0
      %v2173 = vmul.f32 %v2141, 16.0
      %v2174 = vadd.f32 %v2142, %v1109
      %v2175 = vadd.f32 %v2143, %v1110
      %v2176 = vadd.f32 %v2144, %v1111
      %v2177 = vadd.f32 %v2145, %v1112
      %v2178 = vadd.f32 %v2146, %v1113
      %v2179 = vadd.f32 %v2147, %v1114
      %v2180 = vadd.f32 %v2148, %v1115
      %v2181 = vadd.f32 %v2149, %v1116
      %v2182 = vadd.f32 %v2150, %v1117
      %v2183 = vadd.f32 %v2151, %v1118
      %v2184 = vadd.f32 %v2152, %v1119
      %v2185 = vadd.f32 %v2153, %v1120
      %v2186 = vadd.f32 %v2154, %v1121
      %v2187 = vadd.f32 %v2155, %v1122
      %v2188 = vadd.f32 %v2156, %v1123
      %v2189 = vadd.f32 %v2157, %v1124
      %v2190 = vadd.f32 %v2158, %v1125
      %v2191 = vadd.f32 %v2159, %v1126
      %v2192 = vadd.f32 %v2160, %v1127
      %v2193 = vadd.f32 %v2161, %v1128
      %v2194 = vadd.f32 %v2162, %v1129
      %v2195 = vadd.f32 %v2163, %v1130
      %v2196 = vadd.f32 %v2164, %v1131
      %v2197 = vadd.f32 %v2165, %v1132
      %v2198 = vadd.f32 %v2166, %v1133
      %v2199 = vadd.f32 %v2167, %v1134
      %v2200 = vadd.f32 %v2168, %v1135
      %v2201 = vadd.f32 %v2169, %v1136
      %v2202 = vadd.f32 %v2170, %v1137
      %v2203 = vadd.f32 %v2171, %v1138
      %v2204 = vadd.f32 %v2172, %v1139
      %v2205 = vadd.f32 %v2173, %v1140
      %v2206 = vmul.f32 %v2110, 2.0
      %v2207 = vmul.f32 %v2111, 2.0
      %v2208 = vmul.f32 %v2112, 2.0
      %v2209 = vmul.f32 %v2113, 2.0
      %v2210 = vmul.f32 %v2114, 2.0
      %v2211 = vmul.f32 %v2115, 2.0
      %v2212 = vmul.f32 %v2116, 2.0
      %v2213 = vmul.f32 %v2117, 2.0
      %v2214 = vmul.f32 %v2118, 2.0
      %v2215 = vmul.f32 %v2119, 2.0
      %v2216 = vmul.f32 %v2120, 2.0
      %v2217 = vmul.f32 %v2121, 2.0
      %v2218 = vmul.f32 %v2122, 2.0
      %v2219 = vmul.f32 %v2123, 2.0
      %v2220 = vmul.f32 %v2124, 2.0
      %v2221 = vmul.f32 %v2125, 2.0
      %v2222 = vmul.f32 %v2126, 2.0
      %v2223 = vmul.f32 %v2127, 2.0
      %v2224 = vmul.f32 %v2128, 2.0
      %v2225 = vmul.f32 %v2129, 2.0
      %v2226 = vmul.f32 %v2130, 2.0
      %v2227 = vmul.f32 %v2131, 2.0
      %v2228 = vmul.f32 %v2132, 2.0
      %v2229 = vmul.f32 %v2133, 2.0
      %v2230 = vmul.f32 %v2134, 2.0
      %v2231 = vmul.f32 %v2135, 2.0
      %v2232 = vmul.f32 %v2136, 2.0
      %v2233 = vmul.f32 %v2137, 2.0
      %v2234 = vmul.f32 %v2138, 2.0
      %v2235 = vmul.f32 %v2139, 2.0
      %v2236 = vmul.f32 %v2140, 2.0
      %v2237 = vmul.f32 %v2141, 2.0
      %v2238 = vmul.f32 %v2206, %v2206
      %v2239 = vmul.f32 %v2207, %v2207
      %v2240 = vmul.f32 %v2208, %v2208
      %v2241 = vmul.f32 %v2209, %v2209
      %v2242 = vmul.f32 %v2210, %v2210
      %v2243 = vmul.f32 %v2211, %v2211
      %v2244 = vmul.f32 %v2212, %v2212
      %v2245 = vmul.f32 %v2213, %v2213
      %v2246 = vmul.f32 %v2214, %v2214
      %v2247 = vmul.f32 %v2215, %v2215
      %v2248 = vmul.f32 %v2216, %v2216
      %v2249 = vmul.f32 %v2217, %v2217
      %v2250 = vmul.f32 %v2218, %v2218
      %v2251 = vmul.f32 %v2219, %v2219
      %v2252 = vmul.f32 %v2220, %v2220
      %v2253 = vmul.f32 %v2221, %v2221
      %v2254 = vmul.f32 %v2222, %v2222
      %v2255 = vmul.f32 %v2223, %v2223
      %v2256 = vmul.f32 %v2224, %v2224
      %v2257 = vmul.f32 %v2225, %v2225
      %v2258 = vmul.f32 %v2226, %v2226
      %v2259 = vmul.f32 %v2227, %v2227
      %v2260 = vmul.f32 %v2228, %v2228
      %v2261 = vmul.f32 %v2229, %v2229
      %v2262 = vmul.f32 %v2230, %v2230
      %v2263 = vmul.f32 %v2231, %v2231
      %v2264 = vmul.f32 %v2232, %v2232
      %v2265 = vmul.f32 %v2233, %v2233
      %v2266 = vmul.f32 %v2234, %v2234
      %v2267 = vmul.f32 %v2235, %v2235
      %v2268 = vmul.f32 %v2236, %v2236
      %v2269 = vmul.f32 %v2237, %v2237
      %v2270 = vsel %vm1430, 33.0, 23.0
      %v2271 = vmul.f32 %v2238, %v2270
      %v2272 = vmul.f32 %v2239, %v2270
      %v2273 = vmul.f32 %v2240, %v2270
      %v2274 = vmul.f32 %v2241, %v2270
      %v2275 = vmul.f32 %v2242, %v2270
      %v2276 = vmul.f32 %v2243, %v2270
      %v2277 = vmul.f32 %v2244, %v2270
      %v2278 = vmul.f32 %v2245, %v2270
      %v2279 = vmul.f32 %v2246, %v2270
      %v2280 = vmul.f32 %v2247, %v2270
      %v2281 = vmul.f32 %v2248, %v2270
      %v2282 = vmul.f32 %v2249, %v2270
      %v2283 = vmul.f32 %v2250, %v2270
      %v2284 = vmul.f32 %v2251, %v2270
      %v2285 = vmul.f32 %v2252, %v2270
      %v2286 = vmul.f32 %v2253, %v2270
      %v2287 = vmul.f32 %v2254, %v2270
      %v2288 = vmul.f32 %v2255, %v2270
      %v2289 = vmul.f32 %v2256, %v2270
      %v2290 = vmul.f32 %v2257, %v2270
      %v2291 = vmul.f32 %v2258, %v2270
      %v2292 = vmul.f32 %v2259, %v2270
      %v2293 = vmul.f32 %v2260, %v2270
      %v2294 = vmul.f32 %v2261, %v2270
      %v2295 = vmul.f32 %v2262, %v2270
      %v2296 = vmul.f32 %v2263, %v2270
      %v2297 = vmul.f32 %v2264, %v2270
      %v2298 = vmul.f32 %v2265, %v2270
      %v2299 = vmul.f32 %v2266, %v2270
      %v2300 = vmul.f32 %v2267, %v2270
      %v2301 = vmul.f32 %v2268, %v2270
      %v2302 = vmul.f32 %v2269, %v2270
      %v2303 = vsel %vm1465, %v2271, %v2110
      %v2304 = vsel %vm1465, %v2272, %v2111
      %v2305 = vsel %vm1465, %v2273, %v2112
      %v2306 = vsel %vm1465, %v2274, %v2113
      %v2307 = vsel %vm1465, %v2275, %v2114
      %v2308 = vsel %vm1465, %v2276, %v2115
      %v2309 = vsel %vm1465, %v2277, %v2116
      %v2310 = vsel %vm1465, %v2278, %v2117
      %v2311 = vsel %vm1465, %v2279, %v2118
      %v2312 = vsel %vm1465, %v2280, %v2119
      %v2313 = vsel %vm1465, %v2281, %v2120
      %v2314 = vsel %vm1465, %v2282, %v2121
      %v2315 = vsel %vm1465, %v2283, %v2122
      %v2316 = vsel %vm1465, %v2284, %v2123
      %v2317 = vsel %vm1465, %v2285, %v2124
      %v2318 = vsel %vm1465, %v2286, %v2125
      %v2319 = vsel %vm1465, %v2287, %v2126
      %v2320 = vsel %vm1465, %v2288, %v2127
      %v2321 = vsel %vm1465, %v2289, %v2128
      %v2322 = vsel %vm1465, %v2290, %v2129
      %v2323 = vsel %vm1465, %v2291, %v2130
      %v2324 = vsel %vm1465, %v2292, %v2131
      %v2325 = vsel %vm1465, %v2293, %v2132
      %v2326 = vsel %vm1465, %v2294, %v2133
      %v2327 = vsel %vm1465, %v2295, %v2134
      %v2328 = vsel %vm1465, %v2296, %v2135
      %v2329 = vsel %vm1465, %v2297, %v2136
      %v2330 = vsel %vm1465, %v2298, %v2137
      %v2331 = vsel %vm1465, %v2299, %v2138
      %v2332 = vsel %vm1465, %v2300, %v2139
      %v2333 = vsel %vm1465, %v2301, %v2140
      %v2334 = vsel %vm1465, %v2302, %v2141
      %v2335 = vsel %vm1464, %v2174, %v2303
      %v2336 = vsel %vm1464, %v2175, %v2304
      %v2337 = vsel %vm1464, %v2176, %v2305
      %v2338 = vsel %vm1464, %v2177, %v2306
      %v2339 = vsel %vm1464, %v2178, %v2307
      %v2340 = vsel %vm1464, %v2179, %v2308
      %v2341 = vsel %vm1464, %v2180, %v2309
      %v2342 = vsel %vm1464, %v2181, %v2310
      %v2343 = vsel %vm1464, %v2182, %v2311
      %v2344 = vsel %vm1464, %v2183, %v2312
      %v2345 = vsel %vm1464, %v2184, %v2313
      %v2346 = vsel %vm1464, %v2185, %v2314
      %v2347 = vsel %vm1464, %v2186, %v2315
      %v2348 = vsel %vm1464, %v2187, %v2316
      %v2349 = vsel %vm1464, %v2188, %v2317
      %v2350 = vsel %vm1464, %v2189, %v2318
      %v2351 = vsel %vm1464, %v2190, %v2319
      %v2352 = vsel %vm1464, %v2191, %v2320
      %v2353 = vsel %vm1464, %v2192, %v2321
      %v2354 = vsel %vm1464, %v2193, %v2322
      %v2355 = vsel %vm1464, %v2194, %v2323
      %v2356 = vsel %vm1464, %v2195, %v2324
      %v2357 = vsel %vm1464, %v2196, %v2325
      %v2358 = vsel %vm1464, %v2197, %v2326
      %v2359 = vsel %vm1464, %v2198, %v2327
      %v2360 = vsel %vm1464, %v2199, %v2328
      %v2361 = vsel %vm1464, %v2200, %v2329
      %v2362 = vsel %vm1464, %v2201, %v2330
      %v2363 = vsel %vm1464, %v2202, %v2331
      %v2364 = vsel %vm1464, %v2203, %v2332
      %v2365 = vsel %vm1464, %v2204, %v2333
      %v2366 = vsel %vm1464, %v2205, %v2334
      %s2367 = scalar_lea.vmem %s259, 512
      %2368 = vst.msk [vmem:[%s2367] sm:$0xff] %vm1141, %v2335
      %2369 = vst.msk [vmem:[%s2367 + $0x8] sm:$0xff] %vm1141, %v2336
      %2370 = vst.msk [vmem:[%s2367 + $0x10] sm:$0xff] %vm1141, %v2337
      %2371 = vst.msk [vmem:[%s2367 + $0x18] sm:$0xff] %vm1141, %v2338
      %2372 = vst.msk [vmem:[%s2367 + $0x20] sm:$0xff] %vm1141, %v2339
      %2373 = vst.msk [vmem:[%s2367 + $0x28] sm:$0xff] %vm1141, %v2340
      %2374 = vst.msk [vmem:[%s2367 + $0x30] sm:$0xff] %vm1141, %v2341
      %2375 = vst.msk [vmem:[%s2367 + $0x38] sm:$0xff] %vm1141, %v2342
      %2376 = vst.msk [vmem:[%s2367 + $0x40] sm:$0xff] %vm1141, %v2343
      %2377 = vst.msk [vmem:[%s2367 + $0x48] sm:$0xff] %vm1141, %v2344
      %2378 = vst.msk [vmem:[%s2367 + $0x50] sm:$0xff] %vm1141, %v2345
      %2379 = vst.msk [vmem:[%s2367 + $0x58] sm:$0xff] %vm1141, %v2346
      %2380 = vst.msk [vmem:[%s2367 + $0x60] sm:$0xff] %vm1141, %v2347
      %2381 = vst.msk [vmem:[%s2367 + $0x68] sm:$0xff] %vm1141, %v2348
      %2382 = vst.msk [vmem:[%s2367 + $0x70] sm:$0xff] %vm1141, %v2349
      %2383 = vst.msk [vmem:[%s2367 + $0x78] sm:$0xff] %vm1141, %v2350
      %2384 = vst.msk [vmem:[%s2367 + $0x80] sm:$0xff] %vm1141, %v2351
      %2385 = vst.msk [vmem:[%s2367 + $0x88] sm:$0xff] %vm1141, %v2352
      %2386 = vst.msk [vmem:[%s2367 + $0x90] sm:$0xff] %vm1141, %v2353
      %2387 = vst.msk [vmem:[%s2367 + $0x98] sm:$0xff] %vm1141, %v2354
      %2388 = vst.msk [vmem:[%s2367 + $0xa0] sm:$0xff] %vm1141, %v2355
      %2389 = vst.msk [vmem:[%s2367 + $0xa8] sm:$0xff] %vm1141, %v2356
      %2390 = vst.msk [vmem:[%s2367 + $0xb0] sm:$0xff] %vm1141, %v2357
      %2391 = vst.msk [vmem:[%s2367 + $0xb8] sm:$0xff] %vm1141, %v2358
      %2392 = vst.msk [vmem:[%s2367 + $0xc0] sm:$0xff] %vm1141, %v2359
      %2393 = vst.msk [vmem:[%s2367 + $0xc8] sm:$0xff] %vm1141, %v2360
      %2394 = vst.msk [vmem:[%s2367 + $0xd0] sm:$0xff] %vm1141, %v2361
      %2395 = vst.msk [vmem:[%s2367 + $0xd8] sm:$0xff] %vm1141, %v2362
      %2396 = vst.msk [vmem:[%s2367 + $0xe0] sm:$0xff] %vm1141, %v2363
      %2397 = vst.msk [vmem:[%s2367 + $0xe8] sm:$0xff] %vm1141, %v2364
      %2398 = vst.msk [vmem:[%s2367 + $0xf0] sm:$0xff] %vm1141, %v2365
      %2399 = vst.msk [vmem:[%s2367 + $0xf8] sm:$0xff] %vm1141, %v2366
      %s2400 = smul.u32 32, %s21
      %p2401 = scmp.lt.s32.totalorder %s20, 1
      %s2402 = scalar_select %p2401, %s20, 1
      %p2403 = scmp.lt.s32.totalorder %s2400, 31
      %s2404 = scalar_select %p2403, %s2400, 31
      %s2405 = smul.addr %s2402, 96
      %s2406 = sadd.s32 %s2404, %s2405
      %s2407 = smul.addr %s2406, 8
      %s2408 = scalar_lea.vmem %s3, %s2407
      %s2409 = smul.u32 32, %s21
      %p2410 = scmp.lt.s32.totalorder %s20, 1
      %s2411 = scalar_select %p2410, %s20, 1
      %p2412 = scmp.lt.s32.totalorder %s2409, 31
      %s2413 = scalar_select %p2412, %s2409, 31
      %s2414 = smul.addr %s2411, 96
      %s2415 = sadd.s32 %s2413, %s2414
      %s2416 = smul.addr %s2415, 8
      %s2417 = scalar_lea.vmem %s4, %s2416
      // Predicated region
      $region33: #{tpu_custom_call.1} parent=31 // pred_check
        %p2418 = pneg %p118
      $region34: #{tpu_custom_call.1} parent=31 // pred_check_branch
        %2420 = sbr.rel (%p2418) target = $region36
      $region35: #{tpu_custom_call.1} parent=31 // pred_region
        %s2421 = smul.u32 32, %s21
      $region36: #{tpu_custom_call.1} parent=31 // pred_fallthru
        _
      // Predicated region
      $region37: #{tpu_custom_call.1} parent=31 // pred_check
        %p2422 = pneg %p146
      $region38: #{tpu_custom_call.1} parent=31 // pred_check_branch
        %2424 = sbr.rel (%p2422) target = $region40
      $region39: #{tpu_custom_call.1} parent=31 // pred_region
        %s2425 = smul.u32 32, %s21
      $region40: #{tpu_custom_call.1} parent=31 // pred_fallthru
        _
    $region32: #{tpu_custom_call.1} parent=5 // pred_fallthru
      _
    %p2426 = scmp.le.s32.totalorder 2, %s11
    // Predicated region
    $region41: #{tpu_custom_call.1} parent=5 // pred_check
      %p2427 = pneg %p2426
    $region42: #{tpu_custom_call.1} parent=5 // pred_check_branch
      %2429 = sbr.rel (%p2427) target = $region44
    $region43: #{tpu_custom_call.1} parent=5 // pred_region
      %s2430 = ssub.s32 %s11, 2
      // Predicated region
      $region45: #{tpu_custom_call.1} parent=43 // pred_check
        %p2431 = pneg %p124
      $region46: #{tpu_custom_call.1} parent=43 // pred_check_branch
        %2433 = sbr.rel (%p2431) target = $region48
      $region47: #{tpu_custom_call.1} parent=43 // pred_region
        %s2434 = smul.u32 32, %s23
        %p2435 = scmp.lt.s32.totalorder %s22, 1
        %s2436 = scalar_select %p2435, %s22, 1
        %p2437 = scmp.lt.s32.totalorder %s2434, 31
        %s2438 = scalar_select %p2437, %s2434, 31
        %s2439 = smul.addr %s2436, 96
        %s2440 = sadd.s32 %s2438, %s2439
        %s2441 = smul.addr %s2440, 8
        %s2442 = scalar_lea.vmem %s3, %s2441
      $region48: #{tpu_custom_call.1} parent=43 // pred_fallthru
        _
      // Predicated region
      $region49: #{tpu_custom_call.1} parent=43 // pred_check
        %p2443 = pneg %p152
      $region50: #{tpu_custom_call.1} parent=43 // pred_check_branch
        %2445 = sbr.rel (%p2443) target = $region52
      $region51: #{tpu_custom_call.1} parent=43 // pred_region
        %s2446 = smul.u32 32, %s23
        %p2447 = scmp.lt.s32.totalorder %s22, 1
        %s2448 = scalar_select %p2447, %s22, 1
        %p2449 = scmp.lt.s32.totalorder %s2446, 31
        %s2450 = scalar_select %p2449, %s2446, 31
        %s2451 = smul.addr %s2448, 96
        %s2452 = sadd.s32 %s2450, %s2451
        %s2453 = smul.addr %s2452, 8
        %s2454 = scalar_lea.vmem %s4, %s2453
      $region52: #{tpu_custom_call.1} parent=43 // pred_fallthru
        _
    $region44: #{tpu_custom_call.1} parent=5 // pred_fallthru
      _
  $region6: #{tpu_custom_call.1} parent=0 // loop_footer
    %s15 = sadd.s32 1, %s11
  $region7: #{tpu_custom_call.1} parent=0 // loop_footer_branch
    %10 = sbr.rel target = $region3
  $region8: #{tpu_custom_call.1} parent=0 // loop_exit
    _

</llo_original>
